<compile_context>
chip_gen: v7x
topology: tpu7x:2x2x1
jax: 0.10.0
libtpu: 0.0.40
codegen_flags: <defaults>
</compile_context>

<pallas_src>
import functools

import jax
import jax.numpy as jnp
from jax import lax
from jax.experimental import pallas as pl
from jax.experimental.pallas import tpu as pltpu

_MIB = 1024 * 1024


def _cdiv(a, b):
    return -(-a // b)


def _round_up(a, b):
    return _cdiv(a, b) * b


# --------------------------------------------------------------------------
# Kernel 1: Chebyshev supports (T_0..T_{K-1}), per-node weights and bias.
# --------------------------------------------------------------------------
def _prep_kernel(n_valid, e_ref, wpool_ref, bpool_ref, sup_ref, w_ref, b_ref):
    e = e_ref[...]                                   # [N_pad, D] f32, padded rows = 0
    n_pad = e.shape[0]
    k_cheb = sup_ref.shape[0]

    # adjacency = softmax(relu(E E^T), axis=1) over the *real* N columns only.
    # (logits stay f32: embed_dim is tiny, so this matmul is negligible and the
    #  softmax keeps full precision; the O(N^2) matmuls below use bf16.)
    logits = jnp.maximum(
        jnp.dot(e, e.T, preferred_element_type=jnp.float32), 0.0)
    col = lax.broadcasted_iota(jnp.int32, (n_pad, n_pad), 1)
    valid = col < n_valid
    logits = jnp.where(valid, logits, -1e30)
    m = jnp.max(logits, axis=1, keepdims=True)
    p = jnp.exp(logits - m)
    s = p / jnp.sum(p, axis=1, keepdims=True)
    s = jnp.where(valid, s, 0.0)                     # exact zeros in padded columns

    row = lax.broadcasted_iota(jnp.int32, (n_pad, n_pad), 0)
    eye = (row == col).astype(jnp.float32)

    sup_ref[0] = eye.astype(sup_ref.dtype)           # T_0 = I
    sup_ref[1] = s.astype(sup_ref.dtype)             # T_1 = S
    if k_cheb > 2:
        s_bf = s.astype(jnp.bfloat16)
        t_prev, t_cur = eye, s
        for k in range(2, k_cheb):
            t_next = 2.0 * jnp.dot(s_bf, t_cur.astype(jnp.bfloat16),
                                   preferred_element_type=jnp.float32) - t_prev
            sup_ref[k] = t_next.astype(sup_ref.dtype)
            t_prev, t_cur = t_cur, t_next

    # per-node weights: einsum('nd,dkio->nkio') == E @ flat(weights_pool)
    e_bf = e.astype(jnp.bfloat16)
    w_ref[...] = jnp.dot(e_bf, wpool_ref[...],
                         preferred_element_type=jnp.float32).astype(w_ref.dtype)
    # per-node bias stays f32 (tiny matmul)
    b_ref[...] = jnp.dot(e, bpool_ref[...], preferred_element_type=jnp.float32)


# --------------------------------------------------------------------------
# Kernel 2: graph convolution on a (node-tile, batch-tile) grid.
# --------------------------------------------------------------------------
def _gconv_kernel(sup_ref, xw_ref, w_ref, b_ref, out_ref):
    # sup_ref: [K, Nt, N_pad]   bf16   (Chebyshev terms, rows of this node tile)
    # xw_ref:  [N_pad, bt*I]    bf16   (lane-dense, columns ordered (b, i))
    # w_ref:   [Nt, K*I*O_pad]  bf16   (per-node weights, flat)
    # b_ref:   [Nt, O_pad]      f32
    # out_ref: [bt, Nt, O_pad]  f32
    k_cheb, nt, _ = sup_ref.shape
    o_pad = b_ref.shape[1]
    bt = out_ref.shape[0]
    dim_in = xw_ref.shape[1] // bt

    # (1) MXU: every Chebyshev term for every batch element of this tile, with
    #     a wide lane-dense RHS that was pre-transposed in the wrapper.
    xw = xw_ref[...]
    xg = [jnp.dot(sup_ref[k], xw, preferred_element_type=jnp.float32)
          for k in range(k_cheb)]                    # each [Nt, bt*I] f32

    # (2) Per-(k,i) weight tiles: loaded and widened to f32 exactly once per
    #     grid step; reused by every batch element in the tile.
    w_all = w_ref[...]
    w_tiles = [w_all[:, c * o_pad:(c + 1) * o_pad].astype(jnp.float32)
               for c in range(k_cheb * dim_in)]
    bias = b_ref[...]

    # (3) VPU contraction over (k, i): a register-resident [Nt, O_pad] f32
    #     accumulator per batch element; coefficients are contiguous static
    #     slices of xg; all stores are lane-dense (O_pad is a 128-multiple).
    for b in range(bt):
        acc = bias
        for k in range(k_cheb):
            ck = xg[k][:, b * dim_in:(b + 1) * dim_in]        # [Nt, I]
            for i in range(dim_in):
                acc = acc + ck[:, i:i + 1] * w_tiles[k * dim_in + i]
        out_ref[b] = acc.astype(out_ref.dtype)


def _gconv_vmem_bytes(cheb_k, dim_in, o_pad, n_pad, nt, bt):
    kio = cheb_k * dim_in * o_pad
    blocks = 2 * (cheb_k * nt * n_pad * 2       # supports block (bf16), 2x buffered
                  + n_pad * bt * dim_in * 2     # xw block (bf16)
                  + nt * kio * 2                # weights block (bf16)
                  + nt * o_pad * 4              # bias block (f32)
                  + bt * nt * o_pad * 4)        # out block (f32)
    temps = nt * kio * 4 + cheb_k * nt * bt * dim_in * 4    # widened W + xg
    return blocks + temps


def avwgcn_forward(x, node_embeddings, weights_pool, bias_pool, *, batch_tile=None):
    B, N, dim_in = x.shape
    embed_dim, cheb_k, dim_in_w, dim_out = weights_pool.shape
    assert dim_in_w == dim_in
    assert node_embeddings.shape == (N, embed_dim)
    assert cheb_k >= 2, "AVWGCN always includes identity + adjacency terms"

    x = x.astype(jnp.float32)
    node_embeddings = node_embeddings.astype(jnp.float32)
    weights_pool = weights_pool.astype(jnp.float32)
    bias_pool = bias_pool.astype(jnp.float32)

    # lane/sublane-aligned padded sizes
    o_pad = _round_up(dim_out, 128)
    n_pad = _round_up(N, 128)
    nt = 128                                   # node tile (grid axis); divides n_pad
    kio = cheb_k * dim_in * o_pad

    # ---- batch-tile selection --------------------------------------------
    if batch_tile is None:
        bt = max(1, min(B, _cdiv(256, dim_in)))   # ~256 MXU lanes (v6e/v7x width)
        if B >= 2:
            bt = min(bt, _cdiv(B, 2))             # keep >= 2 batch tiles (v7x: 2 TCs)
        while bt > 1 and bt * cheb_k * dim_in > 4096:
            bt = _cdiv(bt, 2)                     # bound the unrolled FMA count
    else:
        bt = max(1, min(batch_tile, B))
    while bt > 1 and _gconv_vmem_bytes(cheb_k, dim_in, o_pad, n_pad, nt, bt) > 40 * _MIB:
        bt = _cdiv(bt, 2)                         # stay well under v7x's 64 MiB VMEM
    b_pad = bt * _cdiv(B, bt)                     # pad B instead of shrinking to bt=1
    num_t = b_pad // bt
    num_n = n_pad // nt

    # ---- kernel 1: supports / per-node weights / per-node bias ------------
    k1_bytes = (cheb_k * n_pad * n_pad * 2 + n_pad * kio * 2 + n_pad * o_pad * 4
                + n_pad * embed_dim * 4 + embed_dim * kio * 2
                + embed_dim * o_pad * 4 + 6 * n_pad * n_pad * 4)
    assert k1_bytes <= 48 * _MIB, (
        f"AVWGCN prep kernel needs ~{k1_bytes / _MIB:.1f} MiB VMEM (> 48 MiB)")
    # TODO(synk): tile kernel 1 over node blocks for graphs that trip the assert.

    e_pad = jnp.pad(node_embeddings, ((0, n_pad - N), (0, 0)))
    wpool_flat = jnp.pad(weights_pool,
                         ((0, 0), (0, 0), (0, 0), (0, o_pad - dim_out)))
    wpool_flat = wpool_flat.reshape(embed_dim, kio).astype(jnp.bfloat16)
    bpool_pad = jnp.pad(bias_pool, ((0, 0), (0, o_pad - dim_out)))

    vmem = pl.BlockSpec(memory_space=pltpu.MemorySpace.VMEM)
    k1_limit = min(48 * _MIB, max(32 * _MIB, int(k1_bytes * 1.25)))
    supports, weights, bias = pl.pallas_call(
        functools.partial(_prep_kernel, N),
        in_specs=[vmem, vmem, vmem],
        out_specs=(vmem, vmem, vmem),
        out_shape=(
            jax.ShapeDtypeStruct((cheb_k, n_pad, n_pad), jnp.bfloat16),
            jax.ShapeDtypeStruct((n_pad, kio), jnp.bfloat16),
            jax.ShapeDtypeStruct((n_pad, o_pad), jnp.float32),
        ),
        compiler_params=pltpu.CompilerParams(vmem_limit_bytes=k1_limit),
    )(e_pad, wpool_flat, bpool_pad)

    # ---- kernel 2: graph convolution ---------------------------------------
    # Pre-transpose x ONCE host-side so the MXU RHS is lane-dense:
    #   xw[t, m, b*I + i] = x[t*bt + b, m, i]
    x_p = jnp.pad(x, ((0, b_pad - B), (0, n_pad - N), (0, 0)))
    xw = (x_p.reshape(num_t, bt, n_pad, dim_in)
          .transpose(0, 2, 1, 3)
          .reshape(num_t, n_pad, bt * dim_in)
          .astype(jnp.bfloat16))

    k2_bytes = _gconv_vmem_bytes(cheb_k, dim_in, o_pad, n_pad, nt, bt)
    k2_limit = min(48 * _MIB, max(32 * _MIB, int(k2_bytes * 1.25)))
    out_pad = pl.pallas_call(
        _gconv_kernel,
        # node tiles outer / batch tiles inner: the larger supports / weights /
        # bias blocks stay resident across the inner batch loop (no re-DMA).
        grid=(num_n, num_t),
        in_specs=[
            pl.BlockSpec((cheb_k, nt, n_pad), lambda n, t: (0, n, 0)),
            pl.BlockSpec((None, n_pad, bt * dim_in), lambda n, t: (t, 0, 0)),
            pl.BlockSpec((nt, kio), lambda n, t: (n, 0)),
            pl.BlockSpec((nt, o_pad), lambda n, t: (n, 0)),
        ],
        out_specs=pl.BlockSpec((bt, nt, o_pad), lambda n, t: (t, n, 0)),
        out_shape=jax.ShapeDtypeStruct((b_pad, n_pad, o_pad), jnp.float32),
        compiler_params=pltpu.CompilerParams(
            dimension_semantics=("parallel", "parallel"),
            vmem_limit_bytes=k2_limit),
    )(supports, xw, weights, bias)

    return out_pad[:B, :N, :dim_out]


# --------------------------------------------------------------------------
# Pure-JAX (f32) mirror of the PyTorch forward, for verification only.
# --------------------------------------------------------------------------
def avwgcn_reference(x, node_embeddings, weights_pool, bias_pool):
    N = node_embeddings.shape[0]
    cheb_k = weights_pool.shape[1]
    supports = jax.nn.softmax(
        jax.nn.relu(node_embeddings @ node_embeddings.T), axis=1)
    support_set = [jnp.eye(N, dtype=jnp.float32), supports]
    for _ in range(2, cheb_k):
        support_set.append(2.0 * supports @ support_set[-1] - support_set[-2])
    supports = jnp.stack(support_set, axis=0)
    weights = jnp.einsum('nd,dkio->nkio', node_embeddings, weights_pool)
    bias = node_embeddings @ bias_pool
    x_g = jnp.einsum('knm,bmc->bknc', supports, x)
    x_g = jnp.transpose(x_g, (0, 2, 1, 3))
    return jnp.einsum('bnki,nkio->bno', x_g, weights) + bias


if __name__ == "__main__":
    key = jax.random.PRNGKey(0)
    # Small, deliberately unaligned sizes (N=20, B=5) to exercise node/batch
    # padding, the masked softmax, and the multi-tile batch grid.
    B, N, dim_in, dim_out, cheb_k, embed_dim = 5, 20, 4, 8, 3, 8

    k1, k2, k3, k4 = jax.random.split(key, 4)
    x = jax.random.normal(k1, (B, N, dim_in), jnp.float32)
    node_embeddings = jax.random.normal(k2, (N, embed_dim), jnp.float32)
    # deterministic synthetic parameters (the PyTorch module leaves init to the
    # parent model; scaled normal is used here)
    weights_pool = 0.1 * jax.random.normal(
        k3, (embed_dim, cheb_k, dim_in, dim_out), jnp.float32)
    bias_pool = 0.1 * jax.random.normal(k4, (embed_dim, dim_out), jnp.float32)

    out = jax.block_until_ready(
        avwgcn_forward(x, node_embeddings, weights_pool, bias_pool))
    ref = avwgcn_reference(x, node_embeddings, weights_pool, bias_pool)

    assert out.shape == (B, N, dim_out), out.shape
    err = float(jnp.max(jnp.abs(out - ref)))
    # supports / weights / x feed the MXU in bf16 (f32 accumulation), so the
    # tolerance is looser than a pure-f32 pipeline.
    assert jnp.allclose(out, ref, atol=5e-2, rtol=5e-2), err
    print("KERNEL_OK")
</pallas_src>

<mosaic_0001>
module attributes {stable_mosaic.version = 11 : i64} {
  func.func @_prep_kernel(%arg0: memref<128x8xf32, #tpu.memory_space<vmem>>, %arg1: memref<8x1536xbf16, #tpu.memory_space<vmem>>, %arg2: memref<8x128xf32, #tpu.memory_space<vmem>>, %arg3: memref<3x128x128xbf16, #tpu.memory_space<vmem>>, %arg4: memref<128x1536xbf16, #tpu.memory_space<vmem>>, %arg5: memref<128x128xf32, #tpu.memory_space<vmem>>) attributes {dimension_semantics = [], scalar_prefetch = 0 : i64, scratch_operands = 0 : i64, tpu.core_type = #tpu.core_type<tc>} {
    %c0 = arith.constant 0 : index
    %c0_0 = arith.constant 0 : index
    %0 = vector.load %arg0[%c0, %c0_0] : memref<128x8xf32, #tpu.memory_space<vmem>>, vector<128x8xf32>
    %1 = tpu.transpose %0, [1, 0] : vector<128x8xf32> -> vector<8x128xf32>
    %cst = arith.constant dense<0.000000e+00> : vector<128x128xf32>
    %2 = tpu.matmul %0, %1, %cst {dimension_numbers = #tpu.dot_dimension_numbers<[1], [0], [0], [1], [0, 0, 1, 1], [], []>} : vector<128x8xf32>, vector<8x128xf32>, vector<128x128xf32> -> vector<128x128xf32>
    %cst_1 = arith.constant 0.000000e+00 : f32
    %3 = vector.broadcast %cst_1 : f32 to vector<128x128xf32>
    %4 = arith.maximumf %2, %3 : vector<128x128xf32>
    %5 = tpu.iota {dimensions = array<i32: 1>} : vector<128x128xi32>
    %c20_i32 = arith.constant 20 : i32
    %6 = vector.broadcast %c20_i32 : i32 to vector<128x128xi32>
    %7 = arith.cmpi slt, %5, %6 : vector<128x128xi32>
    %cst_2 = arith.constant -1.000000e+30 : f32
    %8 = vector.broadcast %cst_2 : f32 to vector<128x128xf32>
    %9 = arith.select %7, %4, %8 : vector<128x128xi1>, vector<128x128xf32>
    %cst_3 = arith.constant dense<0xFF800000> : vector<128xf32>
    %10 = vector.multi_reduction <maximumf>, %9, %cst_3 [1] : vector<128x128xf32> to vector<128xf32>
    %11 = vector.shape_cast %10 : vector<128xf32> to vector<128x1xf32>
    %12 = vector.broadcast %11 : vector<128x1xf32> to vector<128x128xf32>
    %13 = arith.subf %9, %12 : vector<128x128xf32>
    %14 = math.exp %13 : vector<128x128xf32>
    %cst_4 = arith.constant dense<0.000000e+00> : vector<128xf32>
    %15 = vector.multi_reduction <add>, %14, %cst_4 [1] : vector<128x128xf32> to vector<128xf32>
    %16 = vector.shape_cast %15 : vector<128xf32> to vector<128x1xf32>
    %17 = vector.broadcast %16 : vector<128x1xf32> to vector<128x128xf32>
    %18 = arith.divf %14, %17 : vector<128x128xf32>
    %cst_5 = arith.constant 0.000000e+00 : f32
    %19 = vector.broadcast %cst_5 : f32 to vector<128x128xf32>
    %20 = arith.select %7, %18, %19 : vector<128x128xi1>, vector<128x128xf32>
    %21 = tpu.iota {dimensions = array<i32: 0>} : vector<128x128xi32>
    %22 = arith.cmpi eq, %21, %5 : vector<128x128xi32>
    %23 = arith.extui %22 : vector<128x128xi1> to vector<128x128xi32>
    %24 = arith.sitofp %23 : vector<128x128xi32> to vector<128x128xf32>
    %25 = arith.truncf %24 : vector<128x128xf32> to vector<128x128xbf16>
    %c0_6 = arith.constant 0 : index
    %c0_7 = arith.constant 0 : index
    %c0_8 = arith.constant 0 : index
    %26 = vector.load %arg3[%c0_6, %c0_7, %c0_8] : memref<3x128x128xbf16, #tpu.memory_space<vmem>>, vector<1x128x128xbf16>
    %27 = vector.shape_cast %26 : vector<1x128x128xbf16> to vector<128x128xbf16>
    %28 = vector.shape_cast %25 : vector<128x128xbf16> to vector<1x128x128xbf16>
    tpu.vector_store %arg3[%c0_6, %c0_7, %c0_8], %28 {strides = array<i32>} : memref<3x128x128xbf16, #tpu.memory_space<vmem>>, vector<1x128x128xbf16>,
    %29 = arith.truncf %20 : vector<128x128xf32> to vector<128x128xbf16>
    %c1 = arith.constant 1 : index
    %c0_9 = arith.constant 0 : index
    %c0_10 = arith.constant 0 : index
    %30 = vector.load %arg3[%c1, %c0_9, %c0_10] : memref<3x128x128xbf16, #tpu.memory_space<vmem>>, vector<1x128x128xbf16>
    %31 = vector.shape_cast %30 : vector<1x128x128xbf16> to vector<128x128xbf16>
    %32 = vector.shape_cast %29 : vector<128x128xbf16> to vector<1x128x128xbf16>
    tpu.vector_store %arg3[%c1, %c0_9, %c0_10], %32 {strides = array<i32>} : memref<3x128x128xbf16, #tpu.memory_space<vmem>>, vector<1x128x128xbf16>,
    %33 = arith.truncf %20 : vector<128x128xf32> to vector<128x128xbf16>
    %34 = arith.truncf %20 : vector<128x128xf32> to vector<128x128xbf16>
    %cst_11 = arith.constant dense<0.000000e+00> : vector<128x128xf32>
    %35 = tpu.matmul %33, %34, %cst_11 {dimension_numbers = #tpu.dot_dimension_numbers<[1], [0], [0], [1], [0, 0, 1, 1], [], []>} : vector<128x128xbf16>, vector<128x128xbf16>, vector<128x128xf32> -> vector<128x128xf32>
    %cst_12 = arith.constant 2.000000e+00 : f32
    %36 = vector.broadcast %cst_12 : f32 to vector<128x128xf32>
    %37 = arith.mulf %36, %35 : vector<128x128xf32>
    %38 = arith.subf %37, %24 : vector<128x128xf32>
    %39 = arith.truncf %38 : vector<128x128xf32> to vector<128x128xbf16>
    %c2 = arith.constant 2 : index
    %c0_13 = arith.constant 0 : index
    %c0_14 = arith.constant 0 : index
    %40 = vector.load %arg3[%c2, %c0_13, %c0_14] : memref<3x128x128xbf16, #tpu.memory_space<vmem>>, vector<1x128x128xbf16>
    %41 = vector.shape_cast %40 : vector<1x128x128xbf16> to vector<128x128xbf16>
    %42 = vector.shape_cast %39 : vector<128x128xbf16> to vector<1x128x128xbf16>
    tpu.vector_store %arg3[%c2, %c0_13, %c0_14], %42 {strides = array<i32>} : memref<3x128x128xbf16, #tpu.memory_space<vmem>>, vector<1x128x128xbf16>,
    %43 = arith.truncf %0 : vector<128x8xf32> to vector<128x8xbf16>
    %c0_15 = arith.constant 0 : index
    %c0_16 = arith.constant 0 : index
    %44 = vector.load %arg1[%c0_15, %c0_16] : memref<8x1536xbf16, #tpu.memory_space<vmem>>, vector<8x1536xbf16>
    %cst_17 = arith.constant dense<0.000000e+00> : vector<128x1536xf32>
    %45 = tpu.matmul %43, %44, %cst_17 {dimension_numbers = #tpu.dot_dimension_numbers<[1], [0], [0], [1], [0, 0, 1, 1], [], []>} : vector<128x8xbf16>, vector<8x1536xbf16>, vector<128x1536xf32> -> vector<128x1536xf32>
    %46 = arith.truncf %45 : vector<128x1536xf32> to vector<128x1536xbf16>
    %c0_18 = arith.constant 0 : index
    %c0_19 = arith.constant 0 : index
    %47 = vector.load %arg4[%c0_18, %c0_19] : memref<128x1536xbf16, #tpu.memory_space<vmem>>, vector<128x1536xbf16>
    tpu.vector_store %arg4[%c0_18, %c0_19], %46 {strides = array<i32>} : memref<128x1536xbf16, #tpu.memory_space<vmem>>, vector<128x1536xbf16>,
    %c0_20 = arith.constant 0 : index
    %c0_21 = arith.constant 0 : index
    %48 = vector.load %arg2[%c0_20, %c0_21] : memref<8x128xf32, #tpu.memory_space<vmem>>, vector<8x128xf32>
    %cst_22 = arith.constant dense<0.000000e+00> : vector<128x128xf32>
    %49 = tpu.matmul %0, %48, %cst_22 {dimension_numbers = #tpu.dot_dimension_numbers<[1], [0], [0], [1], [0, 0, 1, 1], [], []>} : vector<128x8xf32>, vector<8x128xf32>, vector<128x128xf32> -> vector<128x128xf32>
    %c0_23 = arith.constant 0 : index
    %c0_24 = arith.constant 0 : index
    %50 = vector.load %arg5[%c0_23, %c0_24] : memref<128x128xf32, #tpu.memory_space<vmem>>, vector<128x128xf32>
    tpu.vector_store %arg5[%c0_23, %c0_24], %49 {strides = array<i32>} : memref<128x128xf32, #tpu.memory_space<vmem>>, vector<128x128xf32>,
    return
  }
}

</mosaic_0001>

<llo_original>
// kernel: tpu_custom_call.1
$region0: #{tpu_custom_call.1}
  #allocation0 [shape = 'u32[]', space=smem, size = 0x4, offset = 0x4, fixed_abs, tag = 'smem constant byte address 0x4 - core index']
  #allocation1 [shape = 'u32[144,128]{1,0:T(1,128)}', space=vmem, size = 0x12000, scoped, tag = 'internal scratch']
  %s0 = inlined_call_operand.vmem [shape: f32[128,8], index: 0, kind: input, shape index: {}]
  %s1 = inlined_call_operand.vmem [shape: bf16[8,1536], index: 1, kind: input, shape index: {}]
  %s2 = inlined_call_operand.vmem [shape: f32[8,128], index: 2, kind: input, shape index: {}]
  %s3 = inlined_call_operand.hbm [shape: bf16[3,128,128], index: 3, kind: output, shape index: {0}]
  %s4 = inlined_call_operand.hbm [shape: bf16[128,1536], index: 4, kind: output, shape index: {1}]
  %s5 = inlined_call_operand.hbm [shape: f32[128,128], index: 5, kind: output, shape index: {2}]
  %6 = xla_tuple %s3, %s4, %s5
  %s7 = sld [smem:[#allocation0]]
  $region38: #{tpu_custom_call.1} parent=0
    _
  %s9 = ssub.s32 1, %s7
  %s10 = scalar_select 0, %s9, %s7
  $region1: #{tpu_custom_call.1} parent=0
    #allocation2 [shape = 'u8[98304]{0}', space=vmem, size = 0x18000, scoped, tag = 'output window, operand 0, single buffered']
    #allocation3 [shape = 's32[1]{0}', space=sflag, size = 0x4, scoped, tag = 'scoped memory for tpu_custom_call.1']
    #allocation4 [shape = 'u8[393216]{0}', space=vmem, size = 0x60000, scoped, tag = 'output window, operand 1, single buffered']
    #allocation5 [shape = 's32[1]{0}', space=sflag, size = 0x4, scoped, tag = 'scoped memory for tpu_custom_call.1']
    #allocation6 [shape = 'u8[65536]{0}', space=vmem, size = 0x10000, scoped, tag = 'output window, operand 2, single buffered']
    %11 = vsyncpa [#allocation3], 0
    %12 = vsyncpa [#allocation5], 0
    // Predicated region
    $region2: #{tpu_custom_call.1} parent=1 // pred_check
      _
    $region3: #{tpu_custom_call.1} parent=1 // pred_check_branch
      %14 = sbr.rel (0) target = $region5
    $region4: #{tpu_custom_call.1} parent=1 // pred_region
      _
    $region5: #{tpu_custom_call.1} parent=1 // pred_fallthru
      _
    // Predicated region
    $region6: #{tpu_custom_call.1} parent=1 // pred_check
      _
    $region7: #{tpu_custom_call.1} parent=1 // pred_check_branch
      %16 = sbr.rel (0) target = $region9
    $region8: #{tpu_custom_call.1} parent=1 // pred_region
      _
    $region9: #{tpu_custom_call.1} parent=1 // pred_fallthru
      _
    // Predicated region
    $region10: #{tpu_custom_call.1} parent=1 // pred_check
      _
    $region11: #{tpu_custom_call.1} parent=1 // pred_check_branch
      %18 = sbr.rel (0) target = $region13
    $region12: #{tpu_custom_call.1} parent=1 // pred_region
      _
    $region13: #{tpu_custom_call.1} parent=1 // pred_fallthru
      _
    %v20 = vld [vmem:[%s0] sm:$0xff]
    %v21 = vld [vmem:[%s0 + $0x8] sm:$0xff]
    %v22 = vld [vmem:[%s0 + $0x10] sm:$0xff]
    %v23 = vld [vmem:[%s0 + $0x18] sm:$0xff]
    %v24 = vld [vmem:[%s0 + $0x20] sm:$0xff]
    %v25 = vld [vmem:[%s0 + $0x28] sm:$0xff]
    %v26 = vld [vmem:[%s0 + $0x30] sm:$0xff]
    %v27 = vld [vmem:[%s0 + $0x38] sm:$0xff]
    %v28 = vld [vmem:[%s0 + $0x40] sm:$0xff]
    %v29 = vld [vmem:[%s0 + $0x48] sm:$0xff]
    %v30 = vld [vmem:[%s0 + $0x50] sm:$0xff]
    %v31 = vld [vmem:[%s0 + $0x58] sm:$0xff]
    %v32 = vld [vmem:[%s0 + $0x60] sm:$0xff]
    %v33 = vld [vmem:[%s0 + $0x68] sm:$0xff]
    %v34 = vld [vmem:[%s0 + $0x70] sm:$0xff]
    %v35 = vld [vmem:[%s0 + $0x78] sm:$0xff]
    %vm36 = vcmask 64512
    %v38 = vsel %vm36, %v20, 0
    %v41 = vsel %vm36, %v21, 0
    %v44 = vsel %vm36, %v22, 0
    %v47 = vsel %vm36, %v23, 0
    %v50 = vsel %vm36, %v24, 0
    %v53 = vsel %vm36, %v25, 0
    %v56 = vsel %vm36, %v26, 0
    %v59 = vsel %vm36, %v27, 0
    %v62 = vsel %vm36, %v28, 0
    %v65 = vsel %vm36, %v29, 0
    %v68 = vsel %vm36, %v30, 0
    %v71 = vsel %vm36, %v31, 0
    %v74 = vsel %vm36, %v32, 0
    %v77 = vsel %vm36, %v33, 0
    %v80 = vsel %vm36, %v34, 0
    %v83 = vsel %vm36, %v35, 0
    %85 = vmatprep.subr.mxu0 0.0
    %86 = vmatpush1.xpose.msra.mxu0 %v38
    %87 = vmatprep.subr.mxu0 0.0
    %88 = vmatpush1.xpose.msra.mxu0 %v41
    %89 = vmatprep.subr.mxu0 0.0
    %90 = vmatpush1.xpose.msra.mxu0 %v44
    %91 = vmatprep.subr.mxu0 0.0
    %92 = vmatpush1.xpose.msra.mxu0 %v47
    %93 = vmatprep.subr.mxu0 0.0
    %94 = vmatpush1.xpose.msra.mxu0 %v50
    %95 = vmatprep.subr.mxu0 0.0
    %96 = vmatpush1.xpose.msra.mxu0 %v53
    %97 = vmatprep.subr.mxu0 0.0
    %98 = vmatpush1.xpose.msra.mxu0 %v56
    %99 = vmatprep.subr.mxu0 0.0
    %100 = vmatpush1.xpose.msra.mxu0 %v59
    %101 = vmatprep.subr.mxu0 0.0
    %102 = vmatpush1.xpose.msra.mxu0 %v62
    %103 = vmatprep.subr.mxu0 0.0
    %104 = vmatpush1.xpose.msra.mxu0 %v65
    %105 = vmatprep.subr.mxu0 0.0
    %106 = vmatpush1.xpose.msra.mxu0 %v68
    %107 = vmatprep.subr.mxu0 0.0
    %108 = vmatpush1.xpose.msra.mxu0 %v71
    %109 = vmatprep.subr.mxu0 0.0
    %110 = vmatpush1.xpose.msra.mxu0 %v74
    %111 = vmatprep.subr.mxu0 0.0
    %112 = vmatpush1.xpose.msra.mxu0 %v77
    %113 = vmatprep.subr.mxu0 0.0
    %114 = vmatpush1.xpose.msra.mxu0 %v80
    %115 = vmatprep.subr.mxu0 0.0
    %116 = vmatpush1.xpose.msra.mxu0 %v83
    %117 = vmatprep.subr.mxu0 0.0
    %118 = vmatpush1.xpose.msra.mxu0 0.0
    %119 = vmatprep.subr.mxu0 0.0
    %120 = vmatpush1.xpose.msra.mxu0 0.0
    %121 = vmatprep.subr.mxu0 0.0
    %122 = vmatpush1.xpose.msra.mxu0 0.0
    %123 = vmatprep.subr.mxu0 0.0
    %124 = vmatpush1.xpose.msra.mxu0 0.0
    %125 = vmatprep.subr.mxu0 0.0
    %126 = vmatpush1.xpose.msra.mxu0 0.0
    %127 = vmatprep.subr.mxu0 0.0
    %128 = vmatpush1.xpose.msra.mxu0 0.0
    %129 = vmatprep.subr.mxu0 0.0
    %130 = vmatpush1.xpose.msra.mxu0 0.0
    %131 = vmatprep.subr.mxu0 0.0
    %132 = vmatpush1.xpose.msra.mxu0 0.0
    %133 = vmatprep.subr.mxu0 0.0
    %134 = vmatpush1.xpose.msra.mxu0 0.0
    %135 = vmatprep.subr.mxu0 0.0
    %136 = vmatpush1.xpose.msra.mxu0 0.0
    %137 = vmatprep.subr.mxu0 0.0
    %138 = vmatpush1.xpose.msra.mxu0 0.0
    %139 = vmatprep.subr.mxu0 0.0
    %140 = vmatpush1.xpose.msra.mxu0 0.0
    %141 = vmatprep.subr.mxu0 0.0
    %142 = vmatpush1.xpose.msra.mxu0 0.0
    %143 = vmatprep.subr.mxu0 0.0
    %144 = vmatpush1.xpose.msra.mxu0 0.0
    %145 = vmatprep.subr.mxu0 0.0
    %146 = vmatpush1.xpose.msra.mxu0 0.0
    %147 = vmatprep.subr.mxu0 0.0
    %148 = vmatpush1.xpose.msra.mxu0 0.0
    %149 = vmatprep.mubr.f32.mxu0 0.0
    %150 = vmatmul.mubr.f32.gmra.mrb[0].mxu0 %v38
    %v151 = vpop.f32.mrb[0].mxu0
    %v152 = vadd.f32 0.0, %v151
    %v153 = vpop.f32.mrb[0].mxu0
    %154 = vmatprep.mubr.f32.mxu0 0.0
    %155 = vmatmul.mubr.f32.gmra.mrb[0].mxu0 %v41
    %v156 = vpop.f32.mrb[0].mxu0
    %v157 = vadd.f32 0.0, %v156
    %v158 = vpop.f32.mrb[0].mxu0
    %159 = vmatprep.mubr.f32.mxu0 0.0
    %160 = vmatmul.mubr.f32.gmra.mrb[0].mxu0 %v44
    %v161 = vpop.f32.mrb[0].mxu0
    %v162 = vadd.f32 0.0, %v161
    %v163 = vpop.f32.mrb[0].mxu0
    %164 = vmatprep.mubr.f32.mxu0 0.0
    %165 = vmatmul.mubr.f32.gmra.mrb[0].mxu0 %v47
    %v166 = vpop.f32.mrb[0].mxu0
    %v167 = vadd.f32 0.0, %v166
    %v168 = vpop.f32.mrb[0].mxu0
    %169 = vmatprep.mubr.f32.mxu0 0.0
    %170 = vmatmul.mubr.f32.gmra.mrb[0].mxu0 %v50
    %v171 = vpop.f32.mrb[0].mxu0
    %v172 = vadd.f32 0.0, %v171
    %v173 = vpop.f32.mrb[0].mxu0
    %174 = vmatprep.mubr.f32.mxu0 0.0
    %175 = vmatmul.mubr.f32.gmra.mrb[0].mxu0 %v53
    %v176 = vpop.f32.mrb[0].mxu0
    %v177 = vadd.f32 0.0, %v176
    %v178 = vpop.f32.mrb[0].mxu0
    %179 = vmatprep.mubr.f32.mxu0 0.0
    %180 = vmatmul.mubr.f32.gmra.mrb[0].mxu0 %v56
    %v181 = vpop.f32.mrb[0].mxu0
    %v182 = vadd.f32 0.0, %v181
    %v183 = vpop.f32.mrb[0].mxu0
    %184 = vmatprep.mubr.f32.mxu0 0.0
    %185 = vmatmul.mubr.f32.gmra.mrb[0].mxu0 %v59
    %v186 = vpop.f32.mrb[0].mxu0
    %v187 = vadd.f32 0.0, %v186
    %v188 = vpop.f32.mrb[0].mxu0
    %189 = vmatprep.mubr.f32.mxu0 0.0
    %190 = vmatmul.mubr.f32.gmra.mrb[0].mxu0 %v62
    %v191 = vpop.f32.mrb[0].mxu0
    %v192 = vadd.f32 0.0, %v191
    %v193 = vpop.f32.mrb[0].mxu0
    %194 = vmatprep.mubr.f32.mxu0 0.0
    %195 = vmatmul.mubr.f32.gmra.mrb[0].mxu0 %v65
    %v196 = vpop.f32.mrb[0].mxu0
    %v197 = vadd.f32 0.0, %v196
    %v198 = vpop.f32.mrb[0].mxu0
    %199 = vmatprep.mubr.f32.mxu0 0.0
    %200 = vmatmul.mubr.f32.gmra.mrb[0].mxu0 %v68
    %v201 = vpop.f32.mrb[0].mxu0
    %v202 = vadd.f32 0.0, %v201
    %v203 = vpop.f32.mrb[0].mxu0
    %204 = vmatprep.mubr.f32.mxu0 0.0
    %205 = vmatmul.mubr.f32.gmra.mrb[0].mxu0 %v71
    %v206 = vpop.f32.mrb[0].mxu0
    %v207 = vadd.f32 0.0, %v206
    %v208 = vpop.f32.mrb[0].mxu0
    %209 = vmatprep.mubr.f32.mxu0 0.0
    %210 = vmatmul.mubr.f32.gmra.mrb[0].mxu0 %v74
    %v211 = vpop.f32.mrb[0].mxu0
    %v212 = vadd.f32 0.0, %v211
    %v213 = vpop.f32.mrb[0].mxu0
    %214 = vmatprep.mubr.f32.mxu0 0.0
    %215 = vmatmul.mubr.f32.gmra.mrb[0].mxu0 %v77
    %v216 = vpop.f32.mrb[0].mxu0
    %v217 = vadd.f32 0.0, %v216
    %v218 = vpop.f32.mrb[0].mxu0
    %219 = vmatprep.mubr.f32.mxu0 0.0
    %220 = vmatmul.mubr.f32.gmra.mrb[0].mxu0 %v80
    %v221 = vpop.f32.mrb[0].mxu0
    %v222 = vadd.f32 0.0, %v221
    %v223 = vpop.f32.mrb[0].mxu0
    %224 = vmatprep.mubr.f32.mxu0 0.0
    %225 = vmatmul.mubr.f32.gmra.mrb[0].mxu0 %v83
    %v226 = vpop.f32.mrb[0].mxu0
    %v227 = vadd.f32 0.0, %v226
    %v228 = vpop.f32.mrb[0].mxu0
    %229 = vdwg.mxu0
    %v230 = vmax.f32 %v152, 0.0
    %v231 = vmax.f32 %v157, 0.0
    %v232 = vmax.f32 %v162, 0.0
    %v233 = vmax.f32 %v167, 0.0
    %v234 = vmax.f32 %v172, 0.0
    %v235 = vmax.f32 %v177, 0.0
    %v236 = vmax.f32 %v182, 0.0
    %v237 = vmax.f32 %v187, 0.0
    %v238 = vmax.f32 %v192, 0.0
    %v239 = vmax.f32 %v197, 0.0
    %v240 = vmax.f32 %v202, 0.0
    %v241 = vmax.f32 %v207, 0.0
    %v242 = vmax.f32 %v212, 0.0
    %v243 = vmax.f32 %v217, 0.0
    %v244 = vmax.f32 %v222, 0.0
    %v245 = vmax.f32 %v227, 0.0
    %v246 = vlaneseq
    %v247 = vand.u32 %v246, 127
    %vm248 = vcmp.lt.s32.totalorder %v247, 20
    %v249 = vsel %vm248, %v230, -1e+30
    %v250 = vsel %vm248, %v231, -1e+30
    %v251 = vsel %vm248, %v232, -1e+30
    %v252 = vsel %vm248, %v233, -1e+30
    %v253 = vsel %vm248, %v234, -1e+30
    %v254 = vsel %vm248, %v235, -1e+30
    %v255 = vsel %vm248, %v236, -1e+30
    %v256 = vsel %vm248, %v237, -1e+30
    %v257 = vsel %vm248, %v238, -1e+30
    %v258 = vsel %vm248, %v239, -1e+30
    %v259 = vsel %vm248, %v240, -1e+30
    %v260 = vsel %vm248, %v241, -1e+30
    %v261 = vsel %vm248, %v242, -1e+30
    %v262 = vsel %vm248, %v243, -1e+30
    %v263 = vsel %vm248, %v244, -1e+30
    %v264 = vsel %vm248, %v245, -1e+30
    %265 = vmax.xlane.f32.xlu0 %v249
    %v266 = vpop.xlane.xlu0 %265
    %267 = vmax.xlane.f32.xlu0 %v250
    %v268 = vpop.xlane.xlu0 %267
    %269 = vmax.xlane.f32.xlu0 %v251
    %v270 = vpop.xlane.xlu0 %269
    %271 = vmax.xlane.f32.xlu0 %v252
    %v272 = vpop.xlane.xlu0 %271
    %273 = vmax.xlane.f32.xlu0 %v253
    %v274 = vpop.xlane.xlu0 %273
    %275 = vmax.xlane.f32.xlu0 %v254
    %v276 = vpop.xlane.xlu0 %275
    %277 = vmax.xlane.f32.xlu0 %v255
    %v278 = vpop.xlane.xlu0 %277
    %279 = vmax.xlane.f32.xlu0 %v256
    %v280 = vpop.xlane.xlu0 %279
    %281 = vmax.xlane.f32.xlu0 %v257
    %v282 = vpop.xlane.xlu0 %281
    %283 = vmax.xlane.f32.xlu0 %v258
    %v284 = vpop.xlane.xlu0 %283
    %285 = vmax.xlane.f32.xlu0 %v259
    %v286 = vpop.xlane.xlu0 %285
    %287 = vmax.xlane.f32.xlu0 %v260
    %v288 = vpop.xlane.xlu0 %287
    %289 = vmax.xlane.f32.xlu0 %v261
    %v290 = vpop.xlane.xlu0 %289
    %291 = vmax.xlane.f32.xlu0 %v262
    %v292 = vpop.xlane.xlu0 %291
    %293 = vmax.xlane.f32.xlu0 %v263
    %v294 = vpop.xlane.xlu0 %293
    %295 = vmax.xlane.f32.xlu0 %v264
    %v296 = vpop.xlane.xlu0 %295
    %v297 = vsub.f32 %v249, %v266
    %v298 = vsub.f32 %v250, %v268
    %v299 = vsub.f32 %v251, %v270
    %v300 = vsub.f32 %v252, %v272
    %v301 = vsub.f32 %v253, %v274
    %v302 = vsub.f32 %v254, %v276
    %v303 = vsub.f32 %v255, %v278
    %v304 = vsub.f32 %v256, %v280
    %v305 = vsub.f32 %v257, %v282
    %v306 = vsub.f32 %v258, %v284
    %v307 = vsub.f32 %v259, %v286
    %v308 = vsub.f32 %v260, %v288
    %v309 = vsub.f32 %v261, %v290
    %v310 = vsub.f32 %v262, %v292
    %v311 = vsub.f32 %v263, %v294
    %v312 = vsub.f32 %v264, %v296
    %v313 = vmul.f32 %v297, 1.442695
    %v314 = vpow.pop %v313
    %v315 = vmul.f32 %v298, 1.442695
    %v316 = vpow.pop %v315
    %v317 = vmul.f32 %v299, 1.442695
    %v318 = vpow.pop %v317
    %v319 = vmul.f32 %v300, 1.442695
    %v320 = vpow.pop %v319
    %v321 = vmul.f32 %v301, 1.442695
    %v322 = vpow.pop %v321
    %v323 = vmul.f32 %v302, 1.442695
    %v324 = vpow.pop %v323
    %v325 = vmul.f32 %v303, 1.442695
    %v326 = vpow.pop %v325
    %v327 = vmul.f32 %v304, 1.442695
    %v328 = vpow.pop %v327
    %v329 = vmul.f32 %v305, 1.442695
    %v330 = vpow.pop %v329
    %v331 = vmul.f32 %v306, 1.442695
    %v332 = vpow.pop %v331
    %v333 = vmul.f32 %v307, 1.442695
    %v334 = vpow.pop %v333
    %v335 = vmul.f32 %v308, 1.442695
    %v336 = vpow.pop %v335
    %v337 = vmul.f32 %v309, 1.442695
    %v338 = vpow.pop %v337
    %v339 = vmul.f32 %v310, 1.442695
    %v340 = vpow.pop %v339
    %v341 = vmul.f32 %v311, 1.442695
    %v342 = vpow.pop %v341
    %v343 = vmul.f32 %v312, 1.442695
    %v344 = vpow.pop %v343
    %345 = vadd.xlane.f32.xlu0 %v314
    %v346 = vpop.xlane.xlu0 %345
    %347 = vadd.xlane.f32.xlu0 %v316
    %v348 = vpop.xlane.xlu0 %347
    %349 = vadd.xlane.f32.xlu0 %v318
    %v350 = vpop.xlane.xlu0 %349
    %351 = vadd.xlane.f32.xlu0 %v320
    %v352 = vpop.xlane.xlu0 %351
    %353 = vadd.xlane.f32.xlu0 %v322
    %v354 = vpop.xlane.xlu0 %353
    %355 = vadd.xlane.f32.xlu0 %v324
    %v356 = vpop.xlane.xlu0 %355
    %357 = vadd.xlane.f32.xlu0 %v326
    %v358 = vpop.xlane.xlu0 %357
    %359 = vadd.xlane.f32.xlu0 %v328
    %v360 = vpop.xlane.xlu0 %359
    %361 = vadd.xlane.f32.xlu0 %v330
    %v362 = vpop.xlane.xlu0 %361
    %363 = vadd.xlane.f32.xlu0 %v332
    %v364 = vpop.xlane.xlu0 %363
    %365 = vadd.xlane.f32.xlu0 %v334
    %v366 = vpop.xlane.xlu0 %365
    %367 = vadd.xlane.f32.xlu0 %v336
    %v368 = vpop.xlane.xlu0 %367
    %369 = vadd.xlane.f32.xlu0 %v338
    %v370 = vpop.xlane.xlu0 %369
    %371 = vadd.xlane.f32.xlu0 %v340
    %v372 = vpop.xlane.xlu0 %371
    %373 = vadd.xlane.f32.xlu0 %v342
    %v374 = vpop.xlane.xlu0 %373
    %375 = vadd.xlane.f32.xlu0 %v344
    %v376 = vpop.xlane.xlu0 %375
    %v377 = vrcp.pop %v346
    %v378 = vmul.f32 %v314, %v377
    %v379 = vrcp.pop %v348
    %v380 = vmul.f32 %v316, %v379
    %v381 = vrcp.pop %v350
    %v382 = vmul.f32 %v318, %v381
    %v383 = vrcp.pop %v352
    %v384 = vmul.f32 %v320, %v383
    %v385 = vrcp.pop %v354
    %v386 = vmul.f32 %v322, %v385
    %v387 = vrcp.pop %v356
    %v388 = vmul.f32 %v324, %v387
    %v389 = vrcp.pop %v358
    %v390 = vmul.f32 %v326, %v389
    %v391 = vrcp.pop %v360
    %v392 = vmul.f32 %v328, %v391
    %v393 = vrcp.pop %v362
    %v394 = vmul.f32 %v330, %v393
    %v395 = vrcp.pop %v364
    %v396 = vmul.f32 %v332, %v395
    %v397 = vrcp.pop %v366
    %v398 = vmul.f32 %v334, %v397
    %v399 = vrcp.pop %v368
    %v400 = vmul.f32 %v336, %v399
    %v401 = vrcp.pop %v370
    %v402 = vmul.f32 %v338, %v401
    %v403 = vrcp.pop %v372
    %v404 = vmul.f32 %v340, %v403
    %v405 = vrcp.pop %v374
    %v406 = vmul.f32 %v342, %v405
    %v407 = vrcp.pop %v376
    %v408 = vmul.f32 %v344, %v407
    %v409 = vsel %vm248, %v378, 0.0
    %v410 = vsel %vm248, %v380, 0.0
    %v411 = vsel %vm248, %v382, 0.0
    %v412 = vsel %vm248, %v384, 0.0
    %v413 = vsel %vm248, %v386, 0.0
    %v414 = vsel %vm248, %v388, 0.0
    %v415 = vsel %vm248, %v390, 0.0
    %v416 = vsel %vm248, %v392, 0.0
    %v417 = vsel %vm248, %v394, 0.0
    %v418 = vsel %vm248, %v396, 0.0
    %v419 = vsel %vm248, %v398, 0.0
    %v420 = vsel %vm248, %v400, 0.0
    %v421 = vsel %vm248, %v402, 0.0
    %v422 = vsel %vm248, %v404, 0.0
    %v423 = vsel %vm248, %v406, 0.0
    %v424 = vsel %vm248, %v408, 0.0
    %v425 = vlaneseq
    %v426 = vshrl.u32 %v425, 7
    %v427 = vadd.s32 %v426, 8
    %v428 = vadd.s32 %v426, 16
    %v429 = vadd.s32 %v426, 24
    %v430 = vadd.s32 %v426, 32
    %v431 = vadd.s32 %v426, 40
    %v432 = vadd.s32 %v426, 48
    %v433 = vadd.s32 %v426, 56
    %v434 = vadd.s32 %v426, 64
    %v435 = vadd.s32 %v426, 72
    %v436 = vadd.s32 %v426, 80
    %v437 = vadd.s32 %v426, 88
    %v438 = vadd.s32 %v426, 96
    %v439 = vadd.s32 %v426, 104
    %v440 = vadd.s32 %v426, 112
    %v441 = vadd.s32 %v426, 120
    %vm442 = vcmp.eq.s32.totalorder %v426, %v247
    %vm443 = vcmp.eq.s32.totalorder %v427, %v247
    %vm444 = vcmp.eq.s32.totalorder %v428, %v247
    %vm445 = vcmp.eq.s32.totalorder %v429, %v247
    %vm446 = vcmp.eq.s32.totalorder %v430, %v247
    %vm447 = vcmp.eq.s32.totalorder %v431, %v247
    %vm448 = vcmp.eq.s32.totalorder %v432, %v247
    %vm449 = vcmp.eq.s32.totalorder %v433, %v247
    %vm450 = vcmp.eq.s32.totalorder %v434, %v247
    %vm451 = vcmp.eq.s32.totalorder %v435, %v247
    %vm452 = vcmp.eq.s32.totalorder %v436, %v247
    %vm453 = vcmp.eq.s32.totalorder %v437, %v247
    %vm454 = vcmp.eq.s32.totalorder %v438, %v247
    %vm455 = vcmp.eq.s32.totalorder %v439, %v247
    %vm456 = vcmp.eq.s32.totalorder %v440, %v247
    %vm457 = vcmp.eq.s32.totalorder %v441, %v247
    %v458 = vsel %vm442, 1, 0
    %v459 = vsel %vm443, 1, 0
    %v460 = vsel %vm444, 1, 0
    %v461 = vsel %vm445, 1, 0
    %v462 = vsel %vm446, 1, 0
    %v463 = vsel %vm447, 1, 0
    %v464 = vsel %vm448, 1, 0
    %v465 = vsel %vm449, 1, 0
    %v466 = vsel %vm450, 1, 0
    %v467 = vsel %vm451, 1, 0
    %v468 = vsel %vm452, 1, 0
    %v469 = vsel %vm453, 1, 0
    %v470 = vsel %vm454, 1, 0
    %v471 = vsel %vm455, 1, 0
    %v472 = vsel %vm456, 1, 0
    %v473 = vsel %vm457, 1, 0
    %v474 = vcvt.s32.f32 %v458
    %v475 = vcvt.s32.f32 %v459
    %v476 = vcvt.s32.f32 %v460
    %v477 = vcvt.s32.f32 %v461
    %v478 = vcvt.s32.f32 %v462
    %v479 = vcvt.s32.f32 %v463
    %v480 = vcvt.s32.f32 %v464
    %v481 = vcvt.s32.f32 %v465
    %v482 = vcvt.s32.f32 %v466
    %v483 = vcvt.s32.f32 %v467
    %v484 = vcvt.s32.f32 %v468
    %v485 = vcvt.s32.f32 %v469
    %v486 = vcvt.s32.f32 %v470
    %v487 = vcvt.s32.f32 %v471
    %v488 = vcvt.s32.f32 %v472
    %v489 = vcvt.s32.f32 %v473
    %v490 = vpack.c.bf16 %v475, %v474
    %v491 = vpack.c.bf16 %v477, %v476
    %v492 = vpack.c.bf16 %v479, %v478
    %v493 = vpack.c.bf16 %v481, %v480
    %v494 = vpack.c.bf16 %v483, %v482
    %v495 = vpack.c.bf16 %v485, %v484
    %v496 = vpack.c.bf16 %v487, %v486
    %v497 = vpack.c.bf16 %v489, %v488
    %v506 = vunpack.c.l.b16 %v490
    %v507 = vunpack.c.h.b16 %v490
    %v508 = vunpack.c.l.b16 %v491
    %v509 = vunpack.c.h.b16 %v491
    %v510 = vunpack.c.l.b16 %v492
    %v511 = vunpack.c.h.b16 %v492
    %v512 = vunpack.c.l.b16 %v493
    %v513 = vunpack.c.h.b16 %v493
    %v514 = vunpack.c.l.b16 %v494
    %v515 = vunpack.c.h.b16 %v494
    %v516 = vunpack.c.l.b16 %v495
    %v517 = vunpack.c.h.b16 %v495
    %v518 = vunpack.c.l.b16 %v496
    %v519 = vunpack.c.h.b16 %v496
    %v520 = vunpack.c.l.b16 %v497
    %v521 = vunpack.c.h.b16 %v497
    %v522 = vpack.c.b16 %v506, %v506
    %v523 = vpack.c.b16 %v507, %v507
    %v524 = vpack.c.b16 %v508, %v508
    %v525 = vpack.c.b16 %v509, %v509
    %v526 = vpack.c.b16 %v510, %v510
    %v527 = vpack.c.b16 %v511, %v511
    %v528 = vpack.c.b16 %v512, %v512
    %v529 = vpack.c.b16 %v513, %v513
    %v530 = vpack.c.b16 %v514, %v514
    %v531 = vpack.c.b16 %v515, %v515
    %v532 = vpack.c.b16 %v516, %v516
    %v533 = vpack.c.b16 %v517, %v517
    %v534 = vpack.c.b16 %v518, %v518
    %v535 = vpack.c.b16 %v519, %v519
    %v536 = vpack.c.b16 %v520, %v520
    %v537 = vpack.c.b16 %v521, %v521
    %554 = vst [vmem:[#allocation2] sm:$0xf] %v522
    %555 = vst [vmem:[#allocation2 + $0x4] sm:$0xf] %v523
    %556 = vst [vmem:[#allocation2 + $0x8] sm:$0xf] %v524
    %557 = vst [vmem:[#allocation2 + $0xc] sm:$0xf] %v525
    %558 = vst [vmem:[#allocation2 + $0x10] sm:$0xf] %v526
    %559 = vst [vmem:[#allocation2 + $0x14] sm:$0xf] %v527
    %560 = vst [vmem:[#allocation2 + $0x18] sm:$0xf] %v528
    %561 = vst [vmem:[#allocation2 + $0x1c] sm:$0xf] %v529
    %562 = vst [vmem:[#allocation2 + $0x20] sm:$0xf] %v530
    %563 = vst [vmem:[#allocation2 + $0x24] sm:$0xf] %v531
    %564 = vst [vmem:[#allocation2 + $0x28] sm:$0xf] %v532
    %565 = vst [vmem:[#allocation2 + $0x2c] sm:$0xf] %v533
    %566 = vst [vmem:[#allocation2 + $0x30] sm:$0xf] %v534
    %567 = vst [vmem:[#allocation2 + $0x34] sm:$0xf] %v535
    %568 = vst [vmem:[#allocation2 + $0x38] sm:$0xf] %v536
    %569 = vst [vmem:[#allocation2 + $0x3c] sm:$0xf] %v537
    %v570 = vpack.c.bf16 %v410, %v409
    %v571 = vpack.c.bf16 %v412, %v411
    %v572 = vpack.c.bf16 %v414, %v413
    %v573 = vpack.c.bf16 %v416, %v415
    %v574 = vpack.c.bf16 %v418, %v417
    %v575 = vpack.c.bf16 %v420, %v419
    %v576 = vpack.c.bf16 %v422, %v421
    %v577 = vpack.c.bf16 %v424, %v423
    %v586 = vunpack.c.l.b16 %v570
    %v587 = vunpack.c.h.b16 %v570
    %v588 = vunpack.c.l.b16 %v571
    %v589 = vunpack.c.h.b16 %v571
    %v590 = vunpack.c.l.b16 %v572
    %v591 = vunpack.c.h.b16 %v572
    %v592 = vunpack.c.l.b16 %v573
    %v593 = vunpack.c.h.b16 %v573
    %v594 = vunpack.c.l.b16 %v574
    %v595 = vunpack.c.h.b16 %v574
    %v596 = vunpack.c.l.b16 %v575
    %v597 = vunpack.c.h.b16 %v575
    %v598 = vunpack.c.l.b16 %v576
    %v599 = vunpack.c.h.b16 %v576
    %v600 = vunpack.c.l.b16 %v577
    %v601 = vunpack.c.h.b16 %v577
    %v602 = vpack.c.b16 %v586, %v586
    %v603 = vpack.c.b16 %v587, %v587
    %v604 = vpack.c.b16 %v588, %v588
    %v605 = vpack.c.b16 %v589, %v589
    %v606 = vpack.c.b16 %v590, %v590
    %v607 = vpack.c.b16 %v591, %v591
    %v608 = vpack.c.b16 %v592, %v592
    %v609 = vpack.c.b16 %v593, %v593
    %v610 = vpack.c.b16 %v594, %v594
    %v611 = vpack.c.b16 %v595, %v595
    %v612 = vpack.c.b16 %v596, %v596
    %v613 = vpack.c.b16 %v597, %v597
    %v614 = vpack.c.b16 %v598, %v598
    %v615 = vpack.c.b16 %v599, %v599
    %v616 = vpack.c.b16 %v600, %v600
    %v617 = vpack.c.b16 %v601, %v601
    %s634 = scalar_lea.vmem [#allocation2], 64
    %635 = vst [vmem:[%s634] sm:$0xf] %v602
    %636 = vst [vmem:[%s634 + $0x4] sm:$0xf] %v603
    %637 = vst [vmem:[%s634 + $0x8] sm:$0xf] %v604
    %638 = vst [vmem:[%s634 + $0xc] sm:$0xf] %v605
    %639 = vst [vmem:[%s634 + $0x10] sm:$0xf] %v606
    %640 = vst [vmem:[%s634 + $0x14] sm:$0xf] %v607
    %641 = vst [vmem:[%s634 + $0x18] sm:$0xf] %v608
    %642 = vst [vmem:[%s634 + $0x1c] sm:$0xf] %v609
    %643 = vst [vmem:[%s634 + $0x20] sm:$0xf] %v610
    %644 = vst [vmem:[%s634 + $0x24] sm:$0xf] %v611
    %645 = vst [vmem:[%s634 + $0x28] sm:$0xf] %v612
    %646 = vst [vmem:[%s634 + $0x2c] sm:$0xf] %v613
    %647 = vst [vmem:[%s634 + $0x30] sm:$0xf] %v614
    %648 = vst [vmem:[%s634 + $0x34] sm:$0xf] %v615
    %649 = vst [vmem:[%s634 + $0x38] sm:$0xf] %v616
    %650 = vst [vmem:[%s634 + $0x3c] sm:$0xf] %v617
    %651 = vmatprep.subr.bf16.mxu0 0
    %652 = vmatpush1.bf16.msra.mxu0 %v570
    %653 = vmatprep.subr.bf16.mxu0 0
    %654 = vmatpush1.bf16.msra.mxu0 %v571
    %655 = vmatprep.subr.bf16.mxu0 0
    %656 = vmatpush1.bf16.msra.mxu0 %v572
    %657 = vmatprep.subr.bf16.mxu0 0
    %658 = vmatpush1.bf16.msra.mxu0 %v573
    %659 = vmatprep.subr.bf16.mxu0 0
    %660 = vmatpush1.bf16.msra.mxu0 %v574
    %661 = vmatprep.subr.bf16.mxu0 0
    %662 = vmatpush1.bf16.msra.mxu0 %v575
    %663 = vmatprep.subr.bf16.mxu0 0
    %664 = vmatpush1.bf16.msra.mxu0 %v576
    %665 = vmatprep.subr.bf16.mxu0 0
    %666 = vmatpush1.bf16.msra.mxu0 %v577
    %667 = vmatprep.subr.bf16.mxu0 0
    %668 = vmatpush1.bf16.msra.mxu0 0
    %669 = vmatprep.subr.bf16.mxu0 0
    %670 = vmatpush1.bf16.msra.mxu0 0
    %671 = vmatprep.subr.bf16.mxu0 0
    %672 = vmatpush1.bf16.msra.mxu0 0
    %673 = vmatprep.subr.bf16.mxu0 0
    %674 = vmatpush1.bf16.msra.mxu0 0
    %675 = vmatprep.subr.bf16.mxu0 0
    %676 = vmatpush1.bf16.msra.mxu0 0
    %677 = vmatprep.subr.bf16.mxu0 0
    %678 = vmatpush1.bf16.msra.mxu0 0
    %679 = vmatprep.subr.bf16.mxu0 0
    %680 = vmatpush1.bf16.msra.mxu0 0
    %681 = vmatprep.subr.bf16.mxu0 0
    %682 = vmatpush1.bf16.msra.mxu0 0
    %683 = vmatprep.mubr.bf16.mxu0 0
    %684 = vmatmul.mubr.bf16.gmra.mrb[0].mxu0 %v570
    %v685 = vpop.f32.mrb[0].mxu0
    %v686 = vadd.f32 0.0, %v685
    %v687 = vpop.f32.mrb[0].mxu0
    %v688 = vpop.f32.mrb[0].mxu0
    %v689 = vadd.f32 0.0, %v688
    %v690 = vpop.f32.mrb[0].mxu0
    %691 = vmatprep.mubr.bf16.mxu0 0
    %692 = vmatmul.mubr.bf16.gmra.mrb[0].mxu0 %v571
    %v693 = vpop.f32.mrb[0].mxu0
    %v694 = vadd.f32 0.0, %v693
    %v695 = vpop.f32.mrb[0].mxu0
    %v696 = vpop.f32.mrb[0].mxu0
    %v697 = vadd.f32 0.0, %v696
    %v698 = vpop.f32.mrb[0].mxu0
    %699 = vmatprep.mubr.bf16.mxu0 0
    %700 = vmatmul.mubr.bf16.gmra.mrb[0].mxu0 %v572
    %v701 = vpop.f32.mrb[0].mxu0
    %v702 = vadd.f32 0.0, %v701
    %v703 = vpop.f32.mrb[0].mxu0
    %v704 = vpop.f32.mrb[0].mxu0
    %v705 = vadd.f32 0.0, %v704
    %v706 = vpop.f32.mrb[0].mxu0
    %707 = vmatprep.mubr.bf16.mxu0 0
    %708 = vmatmul.mubr.bf16.gmra.mrb[0].mxu0 %v573
    %v709 = vpop.f32.mrb[0].mxu0
    %v710 = vadd.f32 0.0, %v709
    %v711 = vpop.f32.mrb[0].mxu0
    %v712 = vpop.f32.mrb[0].mxu0
    %v713 = vadd.f32 0.0, %v712
    %v714 = vpop.f32.mrb[0].mxu0
    %715 = vmatprep.mubr.bf16.mxu0 0
    %716 = vmatmul.mubr.bf16.gmra.mrb[0].mxu0 %v574
    %v717 = vpop.f32.mrb[0].mxu0
    %v718 = vadd.f32 0.0, %v717
    %v719 = vpop.f32.mrb[0].mxu0
    %v720 = vpop.f32.mrb[0].mxu0
    %v721 = vadd.f32 0.0, %v720
    %v722 = vpop.f32.mrb[0].mxu0
    %723 = vmatprep.mubr.bf16.mxu0 0
    %724 = vmatmul.mubr.bf16.gmra.mrb[0].mxu0 %v575
    %v725 = vpop.f32.mrb[0].mxu0
    %v726 = vadd.f32 0.0, %v725
    %v727 = vpop.f32.mrb[0].mxu0
    %v728 = vpop.f32.mrb[0].mxu0
    %v729 = vadd.f32 0.0, %v728
    %v730 = vpop.f32.mrb[0].mxu0
    %731 = vmatprep.mubr.bf16.mxu0 0
    %732 = vmatmul.mubr.bf16.gmra.mrb[0].mxu0 %v576
    %v733 = vpop.f32.mrb[0].mxu0
    %v734 = vadd.f32 0.0, %v733
    %v735 = vpop.f32.mrb[0].mxu0
    %v736 = vpop.f32.mrb[0].mxu0
    %v737 = vadd.f32 0.0, %v736
    %v738 = vpop.f32.mrb[0].mxu0
    %739 = vmatprep.mubr.bf16.mxu0 0
    %740 = vmatmul.mubr.bf16.gmra.mrb[0].mxu0 %v577
    %v741 = vpop.f32.mrb[0].mxu0
    %v742 = vadd.f32 0.0, %v741
    %v743 = vpop.f32.mrb[0].mxu0
    %v744 = vpop.f32.mrb[0].mxu0
    %v745 = vadd.f32 0.0, %v744
    %v746 = vpop.f32.mrb[0].mxu0
    %747 = vdwg.mxu0
    %v748 = vmul.f32 %v686, 2.0
    %v749 = vmul.f32 %v689, 2.0
    %v750 = vmul.f32 %v694, 2.0
    %v751 = vmul.f32 %v697, 2.0
    %v752 = vmul.f32 %v702, 2.0
    %v753 = vmul.f32 %v705, 2.0
    %v754 = vmul.f32 %v710, 2.0
    %v755 = vmul.f32 %v713, 2.0
    %v756 = vmul.f32 %v718, 2.0
    %v757 = vmul.f32 %v721, 2.0
    %v758 = vmul.f32 %v726, 2.0
    %v759 = vmul.f32 %v729, 2.0
    %v760 = vmul.f32 %v734, 2.0
    %v761 = vmul.f32 %v737, 2.0
    %v762 = vmul.f32 %v742, 2.0
    %v763 = vmul.f32 %v745, 2.0
    %v764 = vsub.f32 %v748, %v474
    %v765 = vsub.f32 %v749, %v475
    %v766 = vsub.f32 %v750, %v476
    %v767 = vsub.f32 %v751, %v477
    %v768 = vsub.f32 %v752, %v478
    %v769 = vsub.f32 %v753, %v479
    %v770 = vsub.f32 %v754, %v480
    %v771 = vsub.f32 %v755, %v481
    %v772 = vsub.f32 %v756, %v482
    %v773 = vsub.f32 %v757, %v483
    %v774 = vsub.f32 %v758, %v484
    %v775 = vsub.f32 %v759, %v485
    %v776 = vsub.f32 %v760, %v486
    %v777 = vsub.f32 %v761, %v487
    %v778 = vsub.f32 %v762, %v488
    %v779 = vsub.f32 %v763, %v489
    %v780 = vpack.c.bf16 %v765, %v764
    %v781 = vpack.c.bf16 %v767, %v766
    %v782 = vpack.c.bf16 %v769, %v768
    %v783 = vpack.c.bf16 %v771, %v770
    %v784 = vpack.c.bf16 %v773, %v772
    %v785 = vpack.c.bf16 %v775, %v774
    %v786 = vpack.c.bf16 %v777, %v776
    %v787 = vpack.c.bf16 %v779, %v778
    %v796 = vunpack.c.l.b16 %v780
    %v797 = vunpack.c.h.b16 %v780
    %v798 = vunpack.c.l.b16 %v781
    %v799 = vunpack.c.h.b16 %v781
    %v800 = vunpack.c.l.b16 %v782
    %v801 = vunpack.c.h.b16 %v782
    %v802 = vunpack.c.l.b16 %v783
    %v803 = vunpack.c.h.b16 %v783
    %v804 = vunpack.c.l.b16 %v784
    %v805 = vunpack.c.h.b16 %v784
    %v806 = vunpack.c.l.b16 %v785
    %v807 = vunpack.c.h.b16 %v785
    %v808 = vunpack.c.l.b16 %v786
    %v809 = vunpack.c.h.b16 %v786
    %v810 = vunpack.c.l.b16 %v787
    %v811 = vunpack.c.h.b16 %v787
    %v812 = vpack.c.b16 %v796, %v796
    %v813 = vpack.c.b16 %v797, %v797
    %v814 = vpack.c.b16 %v798, %v798
    %v815 = vpack.c.b16 %v799, %v799
    %v816 = vpack.c.b16 %v800, %v800
    %v817 = vpack.c.b16 %v801, %v801
    %v818 = vpack.c.b16 %v802, %v802
    %v819 = vpack.c.b16 %v803, %v803
    %v820 = vpack.c.b16 %v804, %v804
    %v821 = vpack.c.b16 %v805, %v805
    %v822 = vpack.c.b16 %v806, %v806
    %v823 = vpack.c.b16 %v807, %v807
    %v824 = vpack.c.b16 %v808, %v808
    %v825 = vpack.c.b16 %v809, %v809
    %v826 = vpack.c.b16 %v810, %v810
    %v827 = vpack.c.b16 %v811, %v811
    %s844 = scalar_lea.vmem [#allocation2], 128
    %845 = vst [vmem:[%s844] sm:$0xf] %v812
    %846 = vst [vmem:[%s844 + $0x4] sm:$0xf] %v813
    %847 = vst [vmem:[%s844 + $0x8] sm:$0xf] %v814
    %848 = vst [vmem:[%s844 + $0xc] sm:$0xf] %v815
    %849 = vst [vmem:[%s844 + $0x10] sm:$0xf] %v816
    %850 = vst [vmem:[%s844 + $0x14] sm:$0xf] %v817
    %851 = vst [vmem:[%s844 + $0x18] sm:$0xf] %v818
    %852 = vst [vmem:[%s844 + $0x1c] sm:$0xf] %v819
    %853 = vst [vmem:[%s844 + $0x20] sm:$0xf] %v820
    %854 = vst [vmem:[%s844 + $0x24] sm:$0xf] %v821
    %855 = vst [vmem:[%s844 + $0x28] sm:$0xf] %v822
    %856 = vst [vmem:[%s844 + $0x2c] sm:$0xf] %v823
    %857 = vst [vmem:[%s844 + $0x30] sm:$0xf] %v824
    %858 = vst [vmem:[%s844 + $0x34] sm:$0xf] %v825
    %859 = vst [vmem:[%s844 + $0x38] sm:$0xf] %v826
    %860 = vst [vmem:[%s844 + $0x3c] sm:$0xf] %v827
    %v861 = vpack.c.bf16 %v21, %v20
    %v862 = vpack.c.bf16 %v23, %v22
    %v863 = vpack.c.bf16 %v25, %v24
    %v864 = vpack.c.bf16 %v27, %v26
    %v865 = vpack.c.bf16 %v29, %v28
    %v866 = vpack.c.bf16 %v31, %v30
    %v867 = vpack.c.bf16 %v33, %v32
    %v868 = vpack.c.bf16 %v35, %v34
    %v869 = vld [vmem:[%s1] sm:$0xff]
    %v870 = vld [vmem:[%s1 + $0x8] sm:$0xff]
    %v871 = vld [vmem:[%s1 + $0x10] sm:$0xff]
    %v872 = vld [vmem:[%s1 + $0x18] sm:$0xff]
    %v873 = vld [vmem:[%s1 + $0x20] sm:$0xff]
    %v874 = vld [vmem:[%s1 + $0x28] sm:$0xff]
    %v881 = vunpack.c.l.b16 %v869
    %v882 = vunpack.c.h.b16 %v869
    %v883 = vunpack.c.l.b16 %v870
    %v884 = vunpack.c.h.b16 %v870
    %v885 = vunpack.c.l.b16 %v871
    %v886 = vunpack.c.h.b16 %v871
    %v887 = vunpack.c.l.b16 %v872
    %v888 = vunpack.c.h.b16 %v872
    %v889 = vunpack.c.l.b16 %v873
    %v890 = vunpack.c.h.b16 %v873
    %v891 = vunpack.c.l.b16 %v874
    %v892 = vunpack.c.h.b16 %v874
    %v893 = vpack.c.b16 %v881, %v881
    %v894 = vpack.c.b16 %v882, %v882
    %v895 = vpack.c.b16 %v883, %v883
    %v896 = vpack.c.b16 %v884, %v884
    %v897 = vpack.c.b16 %v885, %v885
    %v898 = vpack.c.b16 %v886, %v886
    %v899 = vpack.c.b16 %v887, %v887
    %v900 = vpack.c.b16 %v888, %v888
    %v901 = vpack.c.b16 %v889, %v889
    %v902 = vpack.c.b16 %v890, %v890
    %v903 = vpack.c.b16 %v891, %v891
    %v904 = vpack.c.b16 %v892, %v892
    %v906 = vsel %vm36, %v861, 0
    %v909 = vsel %vm36, %v862, 0
    %v912 = vsel %vm36, %v863, 0
    %v915 = vsel %vm36, %v864, 0
    %v918 = vsel %vm36, %v865, 0
    %v921 = vsel %vm36, %v866, 0
    %v924 = vsel %vm36, %v867, 0
    %v927 = vsel %vm36, %v868, 0
    %vm929 = vcmask 1043456
    %v931 = vsel %vm929, %v893, 0
    %v934 = vsel %vm929, %v894, 0
    %v937 = vsel %vm929, %v895, 0
    %v940 = vsel %vm929, %v896, 0
    %v943 = vsel %vm929, %v897, 0
    %v946 = vsel %vm929, %v898, 0
    %v949 = vsel %vm929, %v899, 0
    %v952 = vsel %vm929, %v900, 0
    %v955 = vsel %vm929, %v901, 0
    %v958 = vsel %vm929, %v902, 0
    %v961 = vsel %vm929, %v903, 0
    %v964 = vsel %vm929, %v904, 0
    %966 = vmatprep.subr.bf16.mxu0 %v934
    %967 = vmatpush1.bf16.msra.mxu0 %v931
    %968 = vmatprep.subr.bf16.mxu0 0
    %969 = vmatpush1.bf16.msra.mxu0 0
    %970 = vmatprep.subr.bf16.mxu0 0
    %971 = vmatpush1.bf16.msra.mxu0 0
    %972 = vmatprep.subr.bf16.mxu0 0
    %973 = vmatpush1.bf16.msra.mxu0 0
    %974 = vmatprep.subr.bf16.mxu0 0
    %975 = vmatpush1.bf16.msra.mxu0 0
    %976 = vmatprep.subr.bf16.mxu0 0
    %977 = vmatpush1.bf16.msra.mxu0 0
    %978 = vmatprep.subr.bf16.mxu0 0
    %979 = vmatpush1.bf16.msra.mxu0 0
    %980 = vmatprep.subr.bf16.mxu0 0
    %981 = vmatpush1.bf16.msra.mxu0 0
    %982 = vmatprep.subr.bf16.mxu0 0
    %983 = vmatpush1.bf16.msra.mxu0 0
    %984 = vmatprep.subr.bf16.mxu0 0
    %985 = vmatpush1.bf16.msra.mxu0 0
    %986 = vmatprep.subr.bf16.mxu0 0
    %987 = vmatpush1.bf16.msra.mxu0 0
    %988 = vmatprep.subr.bf16.mxu0 0
    %989 = vmatpush1.bf16.msra.mxu0 0
    %990 = vmatprep.subr.bf16.mxu0 0
    %991 = vmatpush1.bf16.msra.mxu0 0
    %992 = vmatprep.subr.bf16.mxu0 0
    %993 = vmatpush1.bf16.msra.mxu0 0
    %994 = vmatprep.subr.bf16.mxu0 0
    %995 = vmatpush1.bf16.msra.mxu0 0
    %996 = vmatprep.subr.bf16.mxu0 0
    %997 = vmatpush1.bf16.msra.mxu0 0
    %998 = vmatprep.mubr.bf16.mxu0 0
    %999 = vmatmul.mubr.bf16.gmra.mrb[0].mxu0 %v906
    %v1000 = vpop.f32.mrb[0].mxu0
    %v1001 = vadd.f32 0.0, %v1000
    %v1002 = vpop.f32.mrb[0].mxu0
    %v1003 = vadd.f32 0.0, %v1002
    %v1004 = vpop.f32.mrb[0].mxu0
    %v1005 = vadd.f32 0.0, %v1004
    %v1006 = vpop.f32.mrb[0].mxu0
    %v1007 = vadd.f32 0.0, %v1006
    %1008 = vmatprep.mubr.bf16.mxu0 0
    %1009 = vmatmul.mubr.bf16.gmra.mrb[0].mxu0 %v909
    %v1010 = vpop.f32.mrb[0].mxu0
    %v1011 = vadd.f32 0.0, %v1010
    %v1012 = vpop.f32.mrb[0].mxu0
    %v1013 = vadd.f32 0.0, %v1012
    %v1014 = vpop.f32.mrb[0].mxu0
    %v1015 = vadd.f32 0.0, %v1014
    %v1016 = vpop.f32.mrb[0].mxu0
    %v1017 = vadd.f32 0.0, %v1016
    %1018 = vmatprep.mubr.bf16.mxu0 0
    %1019 = vmatmul.mubr.bf16.gmra.mrb[0].mxu0 %v912
    %v1020 = vpop.f32.mrb[0].mxu0
    %v1021 = vadd.f32 0.0, %v1020
    %v1022 = vpop.f32.mrb[0].mxu0
    %v1023 = vadd.f32 0.0, %v1022
    %v1024 = vpop.f32.mrb[0].mxu0
    %v1025 = vadd.f32 0.0, %v1024
    %v1026 = vpop.f32.mrb[0].mxu0
    %v1027 = vadd.f32 0.0, %v1026
    %1028 = vmatprep.mubr.bf16.mxu0 0
    %1029 = vmatmul.mubr.bf16.gmra.mrb[0].mxu0 %v915
    %v1030 = vpop.f32.mrb[0].mxu0
    %v1031 = vadd.f32 0.0, %v1030
    %v1032 = vpop.f32.mrb[0].mxu0
    %v1033 = vadd.f32 0.0, %v1032
    %v1034 = vpop.f32.mrb[0].mxu0
    %v1035 = vadd.f32 0.0, %v1034
    %v1036 = vpop.f32.mrb[0].mxu0
    %v1037 = vadd.f32 0.0, %v1036
    %1038 = vmatprep.mubr.bf16.mxu0 0
    %1039 = vmatmul.mubr.bf16.gmra.mrb[0].mxu0 %v918
    %v1040 = vpop.f32.mrb[0].mxu0
    %v1041 = vadd.f32 0.0, %v1040
    %v1042 = vpop.f32.mrb[0].mxu0
    %v1043 = vadd.f32 0.0, %v1042
    %v1044 = vpop.f32.mrb[0].mxu0
    %v1045 = vadd.f32 0.0, %v1044
    %v1046 = vpop.f32.mrb[0].mxu0
    %v1047 = vadd.f32 0.0, %v1046
    %1048 = vmatprep.mubr.bf16.mxu0 0
    %1049 = vmatmul.mubr.bf16.gmra.mrb[0].mxu0 %v921
    %v1050 = vpop.f32.mrb[0].mxu0
    %v1051 = vadd.f32 0.0, %v1050
    %v1052 = vpop.f32.mrb[0].mxu0
    %v1053 = vadd.f32 0.0, %v1052
    %v1054 = vpop.f32.mrb[0].mxu0
    %v1055 = vadd.f32 0.0, %v1054
    %v1056 = vpop.f32.mrb[0].mxu0
    %v1057 = vadd.f32 0.0, %v1056
    %1058 = vmatprep.mubr.bf16.mxu0 0
    %1059 = vmatmul.mubr.bf16.gmra.mrb[0].mxu0 %v924
    %v1060 = vpop.f32.mrb[0].mxu0
    %v1061 = vadd.f32 0.0, %v1060
    %v1062 = vpop.f32.mrb[0].mxu0
    %v1063 = vadd.f32 0.0, %v1062
    %v1064 = vpop.f32.mrb[0].mxu0
    %v1065 = vadd.f32 0.0, %v1064
    %v1066 = vpop.f32.mrb[0].mxu0
    %v1067 = vadd.f32 0.0, %v1066
    %1068 = vmatprep.mubr.bf16.mxu0 0
    %1069 = vmatmul.mubr.bf16.gmra.mrb[0].mxu0 %v927
    %v1070 = vpop.f32.mrb[0].mxu0
    %v1071 = vadd.f32 0.0, %v1070
    %v1072 = vpop.f32.mrb[0].mxu0
    %v1073 = vadd.f32 0.0, %v1072
    %v1074 = vpop.f32.mrb[0].mxu0
    %v1075 = vadd.f32 0.0, %v1074
    %v1076 = vpop.f32.mrb[0].mxu0
    %v1077 = vadd.f32 0.0, %v1076
    %1078 = vdwg.mxu0
    %1079 = vmatprep.subr.bf16.mxu0 %v940
    %1080 = vmatpush1.bf16.msra.mxu0 %v937
    %1081 = vmatprep.subr.bf16.mxu0 0
    %1082 = vmatpush1.bf16.msra.mxu0 0
    %1083 = vmatprep.subr.bf16.mxu0 0
    %1084 = vmatpush1.bf16.msra.mxu0 0
    %1085 = vmatprep.subr.bf16.mxu0 0
    %1086 = vmatpush1.bf16.msra.mxu0 0
    %1087 = vmatprep.subr.bf16.mxu0 0
    %1088 = vmatpush1.bf16.msra.mxu0 0
    %1089 = vmatprep.subr.bf16.mxu0 0
    %1090 = vmatpush1.bf16.msra.mxu0 0
    %1091 = vmatprep.subr.bf16.mxu0 0
    %1092 = vmatpush1.bf16.msra.mxu0 0
    %1093 = vmatprep.subr.bf16.mxu0 0
    %1094 = vmatpush1.bf16.msra.mxu0 0
    %1095 = vmatprep.subr.bf16.mxu0 0
    %1096 = vmatpush1.bf16.msra.mxu0 0
    %1097 = vmatprep.subr.bf16.mxu0 0
    %1098 = vmatpush1.bf16.msra.mxu0 0
    %1099 = vmatprep.subr.bf16.mxu0 0
    %1100 = vmatpush1.bf16.msra.mxu0 0
    %1101 = vmatprep.subr.bf16.mxu0 0
    %1102 = vmatpush1.bf16.msra.mxu0 0
    %1103 = vmatprep.subr.bf16.mxu0 0
    %1104 = vmatpush1.bf16.msra.mxu0 0
    %1105 = vmatprep.subr.bf16.mxu0 0
    %1106 = vmatpush1.bf16.msra.mxu0 0
    %1107 = vmatprep.subr.bf16.mxu0 0
    %1108 = vmatpush1.bf16.msra.mxu0 0
    %1109 = vmatprep.subr.bf16.mxu0 0
    %1110 = vmatpush1.bf16.msra.mxu0 0
    %1111 = vmatprep.mubr.bf16.mxu0 0
    %1112 = vmatmul.mubr.bf16.gmra.mrb[0].mxu0 %v906
    %v1113 = vpop.f32.mrb[0].mxu0
    %v1114 = vadd.f32 0.0, %v1113
    %v1115 = vpop.f32.mrb[0].mxu0
    %v1116 = vadd.f32 0.0, %v1115
    %v1117 = vpop.f32.mrb[0].mxu0
    %v1118 = vadd.f32 0.0, %v1117
    %v1119 = vpop.f32.mrb[0].mxu0
    %v1120 = vadd.f32 0.0, %v1119
    %1121 = vmatprep.mubr.bf16.mxu0 0
    %1122 = vmatmul.mubr.bf16.gmra.mrb[0].mxu0 %v909
    %v1123 = vpop.f32.mrb[0].mxu0
    %v1124 = vadd.f32 0.0, %v1123
    %v1125 = vpop.f32.mrb[0].mxu0
    %v1126 = vadd.f32 0.0, %v1125
    %v1127 = vpop.f32.mrb[0].mxu0
    %v1128 = vadd.f32 0.0, %v1127
    %v1129 = vpop.f32.mrb[0].mxu0
    %v1130 = vadd.f32 0.0, %v1129
    %1131 = vmatprep.mubr.bf16.mxu0 0
    %1132 = vmatmul.mubr.bf16.gmra.mrb[0].mxu0 %v912
    %v1133 = vpop.f32.mrb[0].mxu0
    %v1134 = vadd.f32 0.0, %v1133
    %v1135 = vpop.f32.mrb[0].mxu0
    %v1136 = vadd.f32 0.0, %v1135
    %v1137 = vpop.f32.mrb[0].mxu0
    %v1138 = vadd.f32 0.0, %v1137
    %v1139 = vpop.f32.mrb[0].mxu0
    %v1140 = vadd.f32 0.0, %v1139
    %1141 = vmatprep.mubr.bf16.mxu0 0
    %1142 = vmatmul.mubr.bf16.gmra.mrb[0].mxu0 %v915
    %v1143 = vpop.f32.mrb[0].mxu0
    %v1144 = vadd.f32 0.0, %v1143
    %v1145 = vpop.f32.mrb[0].mxu0
    %v1146 = vadd.f32 0.0, %v1145
    %v1147 = vpop.f32.mrb[0].mxu0
    %v1148 = vadd.f32 0.0, %v1147
    %v1149 = vpop.f32.mrb[0].mxu0
    %v1150 = vadd.f32 0.0, %v1149
    %1151 = vmatprep.mubr.bf16.mxu0 0
    %1152 = vmatmul.mubr.bf16.gmra.mrb[0].mxu0 %v918
    %v1153 = vpop.f32.mrb[0].mxu0
    %v1154 = vadd.f32 0.0, %v1153
    %v1155 = vpop.f32.mrb[0].mxu0
    %v1156 = vadd.f32 0.0, %v1155
    %v1157 = vpop.f32.mrb[0].mxu0
    %v1158 = vadd.f32 0.0, %v1157
    %v1159 = vpop.f32.mrb[0].mxu0
    %v1160 = vadd.f32 0.0, %v1159
    %1161 = vmatprep.mubr.bf16.mxu0 0
    %1162 = vmatmul.mubr.bf16.gmra.mrb[0].mxu0 %v921
    %v1163 = vpop.f32.mrb[0].mxu0
    %v1164 = vadd.f32 0.0, %v1163
    %v1165 = vpop.f32.mrb[0].mxu0
    %v1166 = vadd.f32 0.0, %v1165
    %v1167 = vpop.f32.mrb[0].mxu0
    %v1168 = vadd.f32 0.0, %v1167
    %v1169 = vpop.f32.mrb[0].mxu0
    %v1170 = vadd.f32 0.0, %v1169
    %1171 = vmatprep.mubr.bf16.mxu0 0
    %1172 = vmatmul.mubr.bf16.gmra.mrb[0].mxu0 %v924
    %v1173 = vpop.f32.mrb[0].mxu0
    %v1174 = vadd.f32 0.0, %v1173
    %v1175 = vpop.f32.mrb[0].mxu0
    %v1176 = vadd.f32 0.0, %v1175
    %v1177 = vpop.f32.mrb[0].mxu0
    %v1178 = vadd.f32 0.0, %v1177
    %v1179 = vpop.f32.mrb[0].mxu0
    %v1180 = vadd.f32 0.0, %v1179
    %1181 = vmatprep.mubr.bf16.mxu0 0
    %1182 = vmatmul.mubr.bf16.gmra.mrb[0].mxu0 %v927
    %v1183 = vpop.f32.mrb[0].mxu0
    %v1184 = vadd.f32 0.0, %v1183
    %v1185 = vpop.f32.mrb[0].mxu0
    %v1186 = vadd.f32 0.0, %v1185
    %v1187 = vpop.f32.mrb[0].mxu0
    %v1188 = vadd.f32 0.0, %v1187
    %v1189 = vpop.f32.mrb[0].mxu0
    %v1190 = vadd.f32 0.0, %v1189
    %1191 = vdwg.mxu0
    %1192 = vmatprep.subr.bf16.mxu0 %v946
    %1193 = vmatpush1.bf16.msra.mxu0 %v943
    %1194 = vmatprep.subr.bf16.mxu0 0
    %1195 = vmatpush1.bf16.msra.mxu0 0
    %1196 = vmatprep.subr.bf16.mxu0 0
    %1197 = vmatpush1.bf16.msra.mxu0 0
    %1198 = vmatprep.subr.bf16.mxu0 0
    %1199 = vmatpush1.bf16.msra.mxu0 0
    %1200 = vmatprep.subr.bf16.mxu0 0
    %1201 = vmatpush1.bf16.msra.mxu0 0
    %1202 = vmatprep.subr.bf16.mxu0 0
    %1203 = vmatpush1.bf16.msra.mxu0 0
    %1204 = vmatprep.subr.bf16.mxu0 0
    %1205 = vmatpush1.bf16.msra.mxu0 0
    %1206 = vmatprep.subr.bf16.mxu0 0
    %1207 = vmatpush1.bf16.msra.mxu0 0
    %1208 = vmatprep.subr.bf16.mxu0 0
    %1209 = vmatpush1.bf16.msra.mxu0 0
    %1210 = vmatprep.subr.bf16.mxu0 0
    %1211 = vmatpush1.bf16.msra.mxu0 0
    %1212 = vmatprep.subr.bf16.mxu0 0
    %1213 = vmatpush1.bf16.msra.mxu0 0
    %1214 = vmatprep.subr.bf16.mxu0 0
    %1215 = vmatpush1.bf16.msra.mxu0 0
    %1216 = vmatprep.subr.bf16.mxu0 0
    %1217 = vmatpush1.bf16.msra.mxu0 0
    %1218 = vmatprep.subr.bf16.mxu0 0
    %1219 = vmatpush1.bf16.msra.mxu0 0
    %1220 = vmatprep.subr.bf16.mxu0 0
    %1221 = vmatpush1.bf16.msra.mxu0 0
    %1222 = vmatprep.subr.bf16.mxu0 0
    %1223 = vmatpush1.bf16.msra.mxu0 0
    %1224 = vmatprep.mubr.bf16.mxu0 0
    %1225 = vmatmul.mubr.bf16.gmra.mrb[0].mxu0 %v906
    %v1226 = vpop.f32.mrb[0].mxu0
    %v1227 = vadd.f32 0.0, %v1226
    %v1228 = vpop.f32.mrb[0].mxu0
    %v1229 = vadd.f32 0.0, %v1228
    %v1230 = vpop.f32.mrb[0].mxu0
    %v1231 = vadd.f32 0.0, %v1230
    %v1232 = vpop.f32.mrb[0].mxu0
    %v1233 = vadd.f32 0.0, %v1232
    %1234 = vmatprep.mubr.bf16.mxu0 0
    %1235 = vmatmul.mubr.bf16.gmra.mrb[0].mxu0 %v909
    %v1236 = vpop.f32.mrb[0].mxu0
    %v1237 = vadd.f32 0.0, %v1236
    %v1238 = vpop.f32.mrb[0].mxu0
    %v1239 = vadd.f32 0.0, %v1238
    %v1240 = vpop.f32.mrb[0].mxu0
    %v1241 = vadd.f32 0.0, %v1240
    %v1242 = vpop.f32.mrb[0].mxu0
    %v1243 = vadd.f32 0.0, %v1242
    %1244 = vmatprep.mubr.bf16.mxu0 0
    %1245 = vmatmul.mubr.bf16.gmra.mrb[0].mxu0 %v912
    %v1246 = vpop.f32.mrb[0].mxu0
    %v1247 = vadd.f32 0.0, %v1246
    %v1248 = vpop.f32.mrb[0].mxu0
    %v1249 = vadd.f32 0.0, %v1248
    %v1250 = vpop.f32.mrb[0].mxu0
    %v1251 = vadd.f32 0.0, %v1250
    %v1252 = vpop.f32.mrb[0].mxu0
    %v1253 = vadd.f32 0.0, %v1252
    %1254 = vmatprep.mubr.bf16.mxu0 0
    %1255 = vmatmul.mubr.bf16.gmra.mrb[0].mxu0 %v915
    %v1256 = vpop.f32.mrb[0].mxu0
    %v1257 = vadd.f32 0.0, %v1256
    %v1258 = vpop.f32.mrb[0].mxu0
    %v1259 = vadd.f32 0.0, %v1258
    %v1260 = vpop.f32.mrb[0].mxu0
    %v1261 = vadd.f32 0.0, %v1260
    %v1262 = vpop.f32.mrb[0].mxu0
    %v1263 = vadd.f32 0.0, %v1262
    %1264 = vmatprep.mubr.bf16.mxu0 0
    %1265 = vmatmul.mubr.bf16.gmra.mrb[0].mxu0 %v918
    %v1266 = vpop.f32.mrb[0].mxu0
    %v1267 = vadd.f32 0.0, %v1266
    %v1268 = vpop.f32.mrb[0].mxu0
    %v1269 = vadd.f32 0.0, %v1268
    %v1270 = vpop.f32.mrb[0].mxu0
    %v1271 = vadd.f32 0.0, %v1270
    %v1272 = vpop.f32.mrb[0].mxu0
    %v1273 = vadd.f32 0.0, %v1272
    %1274 = vmatprep.mubr.bf16.mxu0 0
    %1275 = vmatmul.mubr.bf16.gmra.mrb[0].mxu0 %v921
    %v1276 = vpop.f32.mrb[0].mxu0
    %v1277 = vadd.f32 0.0, %v1276
    %v1278 = vpop.f32.mrb[0].mxu0
    %v1279 = vadd.f32 0.0, %v1278
    %v1280 = vpop.f32.mrb[0].mxu0
    %v1281 = vadd.f32 0.0, %v1280
    %v1282 = vpop.f32.mrb[0].mxu0
    %v1283 = vadd.f32 0.0, %v1282
    %1284 = vmatprep.mubr.bf16.mxu0 0
    %1285 = vmatmul.mubr.bf16.gmra.mrb[0].mxu0 %v924
    %v1286 = vpop.f32.mrb[0].mxu0
    %v1287 = vadd.f32 0.0, %v1286
    %v1288 = vpop.f32.mrb[0].mxu0
    %v1289 = vadd.f32 0.0, %v1288
    %v1290 = vpop.f32.mrb[0].mxu0
    %v1291 = vadd.f32 0.0, %v1290
    %v1292 = vpop.f32.mrb[0].mxu0
    %v1293 = vadd.f32 0.0, %v1292
    %1294 = vmatprep.mubr.bf16.mxu0 0
    %1295 = vmatmul.mubr.bf16.gmra.mrb[0].mxu0 %v927
    %v1296 = vpop.f32.mrb[0].mxu0
    %v1297 = vadd.f32 0.0, %v1296
    %v1298 = vpop.f32.mrb[0].mxu0
    %v1299 = vadd.f32 0.0, %v1298
    %v1300 = vpop.f32.mrb[0].mxu0
    %v1301 = vadd.f32 0.0, %v1300
    %v1302 = vpop.f32.mrb[0].mxu0
    %v1303 = vadd.f32 0.0, %v1302
    %1304 = vdwg.mxu0
    %1305 = vmatprep.subr.bf16.mxu0 %v952
    %1306 = vmatpush1.bf16.msra.mxu0 %v949
    %1307 = vmatprep.subr.bf16.mxu0 0
    %1308 = vmatpush1.bf16.msra.mxu0 0
    %1309 = vmatprep.subr.bf16.mxu0 0
    %1310 = vmatpush1.bf16.msra.mxu0 0
    %1311 = vmatprep.subr.bf16.mxu0 0
    %1312 = vmatpush1.bf16.msra.mxu0 0
    %1313 = vmatprep.subr.bf16.mxu0 0
    %1314 = vmatpush1.bf16.msra.mxu0 0
    %1315 = vmatprep.subr.bf16.mxu0 0
    %1316 = vmatpush1.bf16.msra.mxu0 0
    %1317 = vmatprep.subr.bf16.mxu0 0
    %1318 = vmatpush1.bf16.msra.mxu0 0
    %1319 = vmatprep.subr.bf16.mxu0 0
    %1320 = vmatpush1.bf16.msra.mxu0 0
    %1321 = vmatprep.subr.bf16.mxu0 0
    %1322 = vmatpush1.bf16.msra.mxu0 0
    %1323 = vmatprep.subr.bf16.mxu0 0
    %1324 = vmatpush1.bf16.msra.mxu0 0
    %1325 = vmatprep.subr.bf16.mxu0 0
    %1326 = vmatpush1.bf16.msra.mxu0 0
    %1327 = vmatprep.subr.bf16.mxu0 0
    %1328 = vmatpush1.bf16.msra.mxu0 0
    %1329 = vmatprep.subr.bf16.mxu0 0
    %1330 = vmatpush1.bf16.msra.mxu0 0
    %1331 = vmatprep.subr.bf16.mxu0 0
    %1332 = vmatpush1.bf16.msra.mxu0 0
    %1333 = vmatprep.subr.bf16.mxu0 0
    %1334 = vmatpush1.bf16.msra.mxu0 0
    %1335 = vmatprep.subr.bf16.mxu0 0
    %1336 = vmatpush1.bf16.msra.mxu0 0
    %1337 = vmatprep.mubr.bf16.mxu0 0
    %1338 = vmatmul.mubr.bf16.gmra.mrb[0].mxu0 %v906
    %v1339 = vpop.f32.mrb[0].mxu0
    %v1340 = vadd.f32 0.0, %v1339
    %v1341 = vpop.f32.mrb[0].mxu0
    %v1342 = vadd.f32 0.0, %v1341
    %v1343 = vpop.f32.mrb[0].mxu0
    %v1344 = vadd.f32 0.0, %v1343
    %v1345 = vpop.f32.mrb[0].mxu0
    %v1346 = vadd.f32 0.0, %v1345
    %1347 = vmatprep.mubr.bf16.mxu0 0
    %1348 = vmatmul.mubr.bf16.gmra.mrb[0].mxu0 %v909
    %v1349 = vpop.f32.mrb[0].mxu0
    %v1350 = vadd.f32 0.0, %v1349
    %v1351 = vpop.f32.mrb[0].mxu0
    %v1352 = vadd.f32 0.0, %v1351
    %v1353 = vpop.f32.mrb[0].mxu0
    %v1354 = vadd.f32 0.0, %v1353
    %v1355 = vpop.f32.mrb[0].mxu0
    %v1356 = vadd.f32 0.0, %v1355
    %1357 = vmatprep.mubr.bf16.mxu0 0
    %1358 = vmatmul.mubr.bf16.gmra.mrb[0].mxu0 %v912
    %v1359 = vpop.f32.mrb[0].mxu0
    %v1360 = vadd.f32 0.0, %v1359
    %v1361 = vpop.f32.mrb[0].mxu0
    %v1362 = vadd.f32 0.0, %v1361
    %v1363 = vpop.f32.mrb[0].mxu0
    %v1364 = vadd.f32 0.0, %v1363
    %v1365 = vpop.f32.mrb[0].mxu0
    %v1366 = vadd.f32 0.0, %v1365
    %1367 = vmatprep.mubr.bf16.mxu0 0
    %1368 = vmatmul.mubr.bf16.gmra.mrb[0].mxu0 %v915
    %v1369 = vpop.f32.mrb[0].mxu0
    %v1370 = vadd.f32 0.0, %v1369
    %v1371 = vpop.f32.mrb[0].mxu0
    %v1372 = vadd.f32 0.0, %v1371
    %v1373 = vpop.f32.mrb[0].mxu0
    %v1374 = vadd.f32 0.0, %v1373
    %v1375 = vpop.f32.mrb[0].mxu0
    %v1376 = vadd.f32 0.0, %v1375
    %1377 = vmatprep.mubr.bf16.mxu0 0
    %1378 = vmatmul.mubr.bf16.gmra.mrb[0].mxu0 %v918
    %v1379 = vpop.f32.mrb[0].mxu0
    %v1380 = vadd.f32 0.0, %v1379
    %v1381 = vpop.f32.mrb[0].mxu0
    %v1382 = vadd.f32 0.0, %v1381
    %v1383 = vpop.f32.mrb[0].mxu0
    %v1384 = vadd.f32 0.0, %v1383
    %v1385 = vpop.f32.mrb[0].mxu0
    %v1386 = vadd.f32 0.0, %v1385
    %1387 = vmatprep.mubr.bf16.mxu0 0
    %1388 = vmatmul.mubr.bf16.gmra.mrb[0].mxu0 %v921
    %v1389 = vpop.f32.mrb[0].mxu0
    %v1390 = vadd.f32 0.0, %v1389
    %v1391 = vpop.f32.mrb[0].mxu0
    %v1392 = vadd.f32 0.0, %v1391
    %v1393 = vpop.f32.mrb[0].mxu0
    %v1394 = vadd.f32 0.0, %v1393
    %v1395 = vpop.f32.mrb[0].mxu0
    %v1396 = vadd.f32 0.0, %v1395
    %1397 = vmatprep.mubr.bf16.mxu0 0
    %1398 = vmatmul.mubr.bf16.gmra.mrb[0].mxu0 %v924
    %v1399 = vpop.f32.mrb[0].mxu0
    %v1400 = vadd.f32 0.0, %v1399
    %v1401 = vpop.f32.mrb[0].mxu0
    %v1402 = vadd.f32 0.0, %v1401
    %v1403 = vpop.f32.mrb[0].mxu0
    %v1404 = vadd.f32 0.0, %v1403
    %v1405 = vpop.f32.mrb[0].mxu0
    %v1406 = vadd.f32 0.0, %v1405
    %1407 = vmatprep.mubr.bf16.mxu0 0
    %1408 = vmatmul.mubr.bf16.gmra.mrb[0].mxu0 %v927
    %v1409 = vpop.f32.mrb[0].mxu0
    %v1410 = vadd.f32 0.0, %v1409
    %v1411 = vpop.f32.mrb[0].mxu0
    %v1412 = vadd.f32 0.0, %v1411
    %v1413 = vpop.f32.mrb[0].mxu0
    %v1414 = vadd.f32 0.0, %v1413
    %v1415 = vpop.f32.mrb[0].mxu0
    %v1416 = vadd.f32 0.0, %v1415
    %1417 = vdwg.mxu0
    %1418 = vmatprep.subr.bf16.mxu0 %v958
    %1419 = vmatpush1.bf16.msra.mxu0 %v955
    %1420 = vmatprep.subr.bf16.mxu0 0
    %1421 = vmatpush1.bf16.msra.mxu0 0
    %1422 = vmatprep.subr.bf16.mxu0 0
    %1423 = vmatpush1.bf16.msra.mxu0 0
    %1424 = vmatprep.subr.bf16.mxu0 0
    %1425 = vmatpush1.bf16.msra.mxu0 0
    %1426 = vmatprep.subr.bf16.mxu0 0
    %1427 = vmatpush1.bf16.msra.mxu0 0
    %1428 = vmatprep.subr.bf16.mxu0 0
    %1429 = vmatpush1.bf16.msra.mxu0 0
    %1430 = vmatprep.subr.bf16.mxu0 0
    %1431 = vmatpush1.bf16.msra.mxu0 0
    %1432 = vmatprep.subr.bf16.mxu0 0
    %1433 = vmatpush1.bf16.msra.mxu0 0
    %1434 = vmatprep.subr.bf16.mxu0 0
    %1435 = vmatpush1.bf16.msra.mxu0 0
    %1436 = vmatprep.subr.bf16.mxu0 0
    %1437 = vmatpush1.bf16.msra.mxu0 0
    %1438 = vmatprep.subr.bf16.mxu0 0
    %1439 = vmatpush1.bf16.msra.mxu0 0
    %1440 = vmatprep.subr.bf16.mxu0 0
    %1441 = vmatpush1.bf16.msra.mxu0 0
    %1442 = vmatprep.subr.bf16.mxu0 0
    %1443 = vmatpush1.bf16.msra.mxu0 0
    %1444 = vmatprep.subr.bf16.mxu0 0
    %1445 = vmatpush1.bf16.msra.mxu0 0
    %1446 = vmatprep.subr.bf16.mxu0 0
    %1447 = vmatpush1.bf16.msra.mxu0 0
    %1448 = vmatprep.subr.bf16.mxu0 0
    %1449 = vmatpush1.bf16.msra.mxu0 0
    %1450 = vmatprep.mubr.bf16.mxu0 0
    %1451 = vmatmul.mubr.bf16.gmra.mrb[0].mxu0 %v906
    %v1452 = vpop.f32.mrb[0].mxu0
    %v1453 = vadd.f32 0.0, %v1452
    %v1454 = vpop.f32.mrb[0].mxu0
    %v1455 = vadd.f32 0.0, %v1454
    %v1456 = vpop.f32.mrb[0].mxu0
    %v1457 = vadd.f32 0.0, %v1456
    %v1458 = vpop.f32.mrb[0].mxu0
    %v1459 = vadd.f32 0.0, %v1458
    %1460 = vmatprep.mubr.bf16.mxu0 0
    %1461 = vmatmul.mubr.bf16.gmra.mrb[0].mxu0 %v909
    %v1462 = vpop.f32.mrb[0].mxu0
    %v1463 = vadd.f32 0.0, %v1462
    %v1464 = vpop.f32.mrb[0].mxu0
    %v1465 = vadd.f32 0.0, %v1464
    %v1466 = vpop.f32.mrb[0].mxu0
    %v1467 = vadd.f32 0.0, %v1466
    %v1468 = vpop.f32.mrb[0].mxu0
    %v1469 = vadd.f32 0.0, %v1468
    %1470 = vmatprep.mubr.bf16.mxu0 0
    %1471 = vmatmul.mubr.bf16.gmra.mrb[0].mxu0 %v912
    %v1472 = vpop.f32.mrb[0].mxu0
    %v1473 = vadd.f32 0.0, %v1472
    %v1474 = vpop.f32.mrb[0].mxu0
    %v1475 = vadd.f32 0.0, %v1474
    %v1476 = vpop.f32.mrb[0].mxu0
    %v1477 = vadd.f32 0.0, %v1476
    %v1478 = vpop.f32.mrb[0].mxu0
    %v1479 = vadd.f32 0.0, %v1478
    %1480 = vmatprep.mubr.bf16.mxu0 0
    %1481 = vmatmul.mubr.bf16.gmra.mrb[0].mxu0 %v915
    %v1482 = vpop.f32.mrb[0].mxu0
    %v1483 = vadd.f32 0.0, %v1482
    %v1484 = vpop.f32.mrb[0].mxu0
    %v1485 = vadd.f32 0.0, %v1484
    %v1486 = vpop.f32.mrb[0].mxu0
    %v1487 = vadd.f32 0.0, %v1486
    %v1488 = vpop.f32.mrb[0].mxu0
    %v1489 = vadd.f32 0.0, %v1488
    %1490 = vmatprep.mubr.bf16.mxu0 0
    %1491 = vmatmul.mubr.bf16.gmra.mrb[0].mxu0 %v918
    %v1492 = vpop.f32.mrb[0].mxu0
    %v1493 = vadd.f32 0.0, %v1492
    %v1494 = vpop.f32.mrb[0].mxu0
    %v1495 = vadd.f32 0.0, %v1494
    %v1496 = vpop.f32.mrb[0].mxu0
    %v1497 = vadd.f32 0.0, %v1496
    %v1498 = vpop.f32.mrb[0].mxu0
    %v1499 = vadd.f32 0.0, %v1498
    %1500 = vmatprep.mubr.bf16.mxu0 0
    %1501 = vmatmul.mubr.bf16.gmra.mrb[0].mxu0 %v921
    %v1502 = vpop.f32.mrb[0].mxu0
    %v1503 = vadd.f32 0.0, %v1502
    %v1504 = vpop.f32.mrb[0].mxu0
    %v1505 = vadd.f32 0.0, %v1504
    %v1506 = vpop.f32.mrb[0].mxu0
    %v1507 = vadd.f32 0.0, %v1506
    %v1508 = vpop.f32.mrb[0].mxu0
    %v1509 = vadd.f32 0.0, %v1508
    %1510 = vmatprep.mubr.bf16.mxu0 0
    %1511 = vmatmul.mubr.bf16.gmra.mrb[0].mxu0 %v924
    %v1512 = vpop.f32.mrb[0].mxu0
    %v1513 = vadd.f32 0.0, %v1512
    %v1514 = vpop.f32.mrb[0].mxu0
    %v1515 = vadd.f32 0.0, %v1514
    %v1516 = vpop.f32.mrb[0].mxu0
    %v1517 = vadd.f32 0.0, %v1516
    %v1518 = vpop.f32.mrb[0].mxu0
    %v1519 = vadd.f32 0.0, %v1518
    %1520 = vmatprep.mubr.bf16.mxu0 0
    %1521 = vmatmul.mubr.bf16.gmra.mrb[0].mxu0 %v927
    %v1522 = vpop.f32.mrb[0].mxu0
    %v1523 = vadd.f32 0.0, %v1522
    %v1524 = vpop.f32.mrb[0].mxu0
    %v1525 = vadd.f32 0.0, %v1524
    %v1526 = vpop.f32.mrb[0].mxu0
    %v1527 = vadd.f32 0.0, %v1526
    %v1528 = vpop.f32.mrb[0].mxu0
    %v1529 = vadd.f32 0.0, %v1528
    %1530 = vdwg.mxu0
    %1531 = vmatprep.subr.bf16.mxu0 %v964
    %1532 = vmatpush1.bf16.msra.mxu0 %v961
    %1533 = vmatprep.subr.bf16.mxu0 0
    %1534 = vmatpush1.bf16.msra.mxu0 0
    %1535 = vmatprep.subr.bf16.mxu0 0
    %1536 = vmatpush1.bf16.msra.mxu0 0
    %1537 = vmatprep.subr.bf16.mxu0 0
    %1538 = vmatpush1.bf16.msra.mxu0 0
    %1539 = vmatprep.subr.bf16.mxu0 0
    %1540 = vmatpush1.bf16.msra.mxu0 0
    %1541 = vmatprep.subr.bf16.mxu0 0
    %1542 = vmatpush1.bf16.msra.mxu0 0
    %1543 = vmatprep.subr.bf16.mxu0 0
    %1544 = vmatpush1.bf16.msra.mxu0 0
    %1545 = vmatprep.subr.bf16.mxu0 0
    %1546 = vmatpush1.bf16.msra.mxu0 0
    %1547 = vmatprep.subr.bf16.mxu0 0
    %1548 = vmatpush1.bf16.msra.mxu0 0
    %1549 = vmatprep.subr.bf16.mxu0 0
    %1550 = vmatpush1.bf16.msra.mxu0 0
    %1551 = vmatprep.subr.bf16.mxu0 0
    %1552 = vmatpush1.bf16.msra.mxu0 0
    %1553 = vmatprep.subr.bf16.mxu0 0
    %1554 = vmatpush1.bf16.msra.mxu0 0
    %1555 = vmatprep.subr.bf16.mxu0 0
    %1556 = vmatpush1.bf16.msra.mxu0 0
    %1557 = vmatprep.subr.bf16.mxu0 0
    %1558 = vmatpush1.bf16.msra.mxu0 0
    %1559 = vmatprep.subr.bf16.mxu0 0
    %1560 = vmatpush1.bf16.msra.mxu0 0
    %1561 = vmatprep.subr.bf16.mxu0 0
    %1562 = vmatpush1.bf16.msra.mxu0 0
    %1563 = vmatprep.mubr.bf16.mxu0 0
    %1564 = vmatmul.mubr.bf16.gmra.mrb[0].mxu0 %v906
    %v1565 = vpop.f32.mrb[0].mxu0
    %v1566 = vadd.f32 0.0, %v1565
    %v1567 = vpop.f32.mrb[0].mxu0
    %v1568 = vadd.f32 0.0, %v1567
    %v1569 = vpop.f32.mrb[0].mxu0
    %v1570 = vadd.f32 0.0, %v1569
    %v1571 = vpop.f32.mrb[0].mxu0
    %v1572 = vadd.f32 0.0, %v1571
    %1573 = vmatprep.mubr.bf16.mxu0 0
    %1574 = vmatmul.mubr.bf16.gmra.mrb[0].mxu0 %v909
    %v1575 = vpop.f32.mrb[0].mxu0
    %v1576 = vadd.f32 0.0, %v1575
    %v1577 = vpop.f32.mrb[0].mxu0
    %v1578 = vadd.f32 0.0, %v1577
    %v1579 = vpop.f32.mrb[0].mxu0
    %v1580 = vadd.f32 0.0, %v1579
    %v1581 = vpop.f32.mrb[0].mxu0
    %v1582 = vadd.f32 0.0, %v1581
    %1583 = vmatprep.mubr.bf16.mxu0 0
    %1584 = vmatmul.mubr.bf16.gmra.mrb[0].mxu0 %v912
    %v1585 = vpop.f32.mrb[0].mxu0
    %v1586 = vadd.f32 0.0, %v1585
    %v1587 = vpop.f32.mrb[0].mxu0
    %v1588 = vadd.f32 0.0, %v1587
    %v1589 = vpop.f32.mrb[0].mxu0
    %v1590 = vadd.f32 0.0, %v1589
    %v1591 = vpop.f32.mrb[0].mxu0
    %v1592 = vadd.f32 0.0, %v1591
    %1593 = vmatprep.mubr.bf16.mxu0 0
    %1594 = vmatmul.mubr.bf16.gmra.mrb[0].mxu0 %v915
    %v1595 = vpop.f32.mrb[0].mxu0
    %v1596 = vadd.f32 0.0, %v1595
    %v1597 = vpop.f32.mrb[0].mxu0
    %v1598 = vadd.f32 0.0, %v1597
    %v1599 = vpop.f32.mrb[0].mxu0
    %v1600 = vadd.f32 0.0, %v1599
    %v1601 = vpop.f32.mrb[0].mxu0
    %v1602 = vadd.f32 0.0, %v1601
    %1603 = vmatprep.mubr.bf16.mxu0 0
    %1604 = vmatmul.mubr.bf16.gmra.mrb[0].mxu0 %v918
    %v1605 = vpop.f32.mrb[0].mxu0
    %v1606 = vadd.f32 0.0, %v1605
    %v1607 = vpop.f32.mrb[0].mxu0
    %v1608 = vadd.f32 0.0, %v1607
    %v1609 = vpop.f32.mrb[0].mxu0
    %v1610 = vadd.f32 0.0, %v1609
    %v1611 = vpop.f32.mrb[0].mxu0
    %v1612 = vadd.f32 0.0, %v1611
    %1613 = vmatprep.mubr.bf16.mxu0 0
    %1614 = vmatmul.mubr.bf16.gmra.mrb[0].mxu0 %v921
    %v1615 = vpop.f32.mrb[0].mxu0
    %v1616 = vadd.f32 0.0, %v1615
    %v1617 = vpop.f32.mrb[0].mxu0
    %v1618 = vadd.f32 0.0, %v1617
    %v1619 = vpop.f32.mrb[0].mxu0
    %v1620 = vadd.f32 0.0, %v1619
    %v1621 = vpop.f32.mrb[0].mxu0
    %v1622 = vadd.f32 0.0, %v1621
    %1623 = vmatprep.mubr.bf16.mxu0 0
    %1624 = vmatmul.mubr.bf16.gmra.mrb[0].mxu0 %v924
    %v1625 = vpop.f32.mrb[0].mxu0
    %v1626 = vadd.f32 0.0, %v1625
    %v1627 = vpop.f32.mrb[0].mxu0
    %v1628 = vadd.f32 0.0, %v1627
    %v1629 = vpop.f32.mrb[0].mxu0
    %v1630 = vadd.f32 0.0, %v1629
    %v1631 = vpop.f32.mrb[0].mxu0
    %v1632 = vadd.f32 0.0, %v1631
    %1633 = vmatprep.mubr.bf16.mxu0 0
    %1634 = vmatmul.mubr.bf16.gmra.mrb[0].mxu0 %v927
    %v1635 = vpop.f32.mrb[0].mxu0
    %v1636 = vadd.f32 0.0, %v1635
    %v1637 = vpop.f32.mrb[0].mxu0
    %v1638 = vadd.f32 0.0, %v1637
    %v1639 = vpop.f32.mrb[0].mxu0
    %v1640 = vadd.f32 0.0, %v1639
    %v1641 = vpop.f32.mrb[0].mxu0
    %v1642 = vadd.f32 0.0, %v1641
    %1643 = vdwg.mxu0
    %v1644 = vpack.c.bf16 %v1005, %v1001
    %v1645 = vpack.c.bf16 %v1007, %v1003
    %v1646 = vpack.c.bf16 %v1118, %v1114
    %v1647 = vpack.c.bf16 %v1120, %v1116
    %v1648 = vpack.c.bf16 %v1231, %v1227
    %v1649 = vpack.c.bf16 %v1233, %v1229
    %v1650 = vpack.c.bf16 %v1344, %v1340
    %v1651 = vpack.c.bf16 %v1346, %v1342
    %v1652 = vpack.c.bf16 %v1457, %v1453
    %v1653 = vpack.c.bf16 %v1459, %v1455
    %v1654 = vpack.c.bf16 %v1570, %v1566
    %v1655 = vpack.c.bf16 %v1572, %v1568
    %v1656 = vpack.c.bf16 %v1015, %v1011
    %v1657 = vpack.c.bf16 %v1017, %v1013
    %v1658 = vpack.c.bf16 %v1128, %v1124
    %v1659 = vpack.c.bf16 %v1130, %v1126
    %v1660 = vpack.c.bf16 %v1241, %v1237
    %v1661 = vpack.c.bf16 %v1243, %v1239
    %v1662 = vpack.c.bf16 %v1354, %v1350
    %v1663 = vpack.c.bf16 %v1356, %v1352
    %v1664 = vpack.c.bf16 %v1467, %v1463
    %v1665 = vpack.c.bf16 %v1469, %v1465
    %v1666 = vpack.c.bf16 %v1580, %v1576
    %v1667 = vpack.c.bf16 %v1582, %v1578
    %v1668 = vpack.c.bf16 %v1025, %v1021
    %v1669 = vpack.c.bf16 %v1027, %v1023
    %v1670 = vpack.c.bf16 %v1138, %v1134
    %v1671 = vpack.c.bf16 %v1140, %v1136
    %v1672 = vpack.c.bf16 %v1251, %v1247
    %v1673 = vpack.c.bf16 %v1253, %v1249
    %v1674 = vpack.c.bf16 %v1364, %v1360
    %v1675 = vpack.c.bf16 %v1366, %v1362
    %v1676 = vpack.c.bf16 %v1477, %v1473
    %v1677 = vpack.c.bf16 %v1479, %v1475
    %v1678 = vpack.c.bf16 %v1590, %v1586
    %v1679 = vpack.c.bf16 %v1592, %v1588
    %v1680 = vpack.c.bf16 %v1035, %v1031
    %v1681 = vpack.c.bf16 %v1037, %v1033
    %v1682 = vpack.c.bf16 %v1148, %v1144
    %v1683 = vpack.c.bf16 %v1150, %v1146
    %v1684 = vpack.c.bf16 %v1261, %v1257
    %v1685 = vpack.c.bf16 %v1263, %v1259
    %v1686 = vpack.c.bf16 %v1374, %v1370
    %v1687 = vpack.c.bf16 %v1376, %v1372
    %v1688 = vpack.c.bf16 %v1487, %v1483
    %v1689 = vpack.c.bf16 %v1489, %v1485
    %v1690 = vpack.c.bf16 %v1600, %v1596
    %v1691 = vpack.c.bf16 %v1602, %v1598
    %v1692 = vpack.c.bf16 %v1045, %v1041
    %v1693 = vpack.c.bf16 %v1047, %v1043
    %v1694 = vpack.c.bf16 %v1158, %v1154
    %v1695 = vpack.c.bf16 %v1160, %v1156
    %v1696 = vpack.c.bf16 %v1271, %v1267
    %v1697 = vpack.c.bf16 %v1273, %v1269
    %v1698 = vpack.c.bf16 %v1384, %v1380
    %v1699 = vpack.c.bf16 %v1386, %v1382
    %v1700 = vpack.c.bf16 %v1497, %v1493
    %v1701 = vpack.c.bf16 %v1499, %v1495
    %v1702 = vpack.c.bf16 %v1610, %v1606
    %v1703 = vpack.c.bf16 %v1612, %v1608
    %v1704 = vpack.c.bf16 %v1055, %v1051
    %v1705 = vpack.c.bf16 %v1057, %v1053
    %v1706 = vpack.c.bf16 %v1168, %v1164
    %v1707 = vpack.c.bf16 %v1170, %v1166
    %v1708 = vpack.c.bf16 %v1281, %v1277
    %v1709 = vpack.c.bf16 %v1283, %v1279
    %v1710 = vpack.c.bf16 %v1394, %v1390
    %v1711 = vpack.c.bf16 %v1396, %v1392
    %v1712 = vpack.c.bf16 %v1507, %v1503
    %v1713 = vpack.c.bf16 %v1509, %v1505
    %v1714 = vpack.c.bf16 %v1620, %v1616
    %v1715 = vpack.c.bf16 %v1622, %v1618
    %v1716 = vpack.c.bf16 %v1065, %v1061
    %v1717 = vpack.c.bf16 %v1067, %v1063
    %v1718 = vpack.c.bf16 %v1178, %v1174
    %v1719 = vpack.c.bf16 %v1180, %v1176
    %v1720 = vpack.c.bf16 %v1291, %v1287
    %v1721 = vpack.c.bf16 %v1293, %v1289
    %v1722 = vpack.c.bf16 %v1404, %v1400
    %v1723 = vpack.c.bf16 %v1406, %v1402
    %v1724 = vpack.c.bf16 %v1517, %v1513
    %v1725 = vpack.c.bf16 %v1519, %v1515
    %v1726 = vpack.c.bf16 %v1630, %v1626
    %v1727 = vpack.c.bf16 %v1632, %v1628
    %v1728 = vpack.c.bf16 %v1075, %v1071
    %v1729 = vpack.c.bf16 %v1077, %v1073
    %v1730 = vpack.c.bf16 %v1188, %v1184
    %v1731 = vpack.c.bf16 %v1190, %v1186
    %v1732 = vpack.c.bf16 %v1301, %v1297
    %v1733 = vpack.c.bf16 %v1303, %v1299
    %v1734 = vpack.c.bf16 %v1414, %v1410
    %v1735 = vpack.c.bf16 %v1416, %v1412
    %v1736 = vpack.c.bf16 %v1527, %v1523
    %v1737 = vpack.c.bf16 %v1529, %v1525
    %v1738 = vpack.c.bf16 %v1640, %v1636
    %v1739 = vpack.c.bf16 %v1642, %v1638
    %v1836 = vunpack.c.l.b16 %v1644
    %v1837 = vunpack.c.l.b16 %v1645
    %v1838 = vunpack.c.l.b16 %v1646
    %v1839 = vunpack.c.l.b16 %v1647
    %v1840 = vunpack.c.l.b16 %v1648
    %v1841 = vunpack.c.l.b16 %v1649
    %v1842 = vunpack.c.l.b16 %v1650
    %v1843 = vunpack.c.l.b16 %v1651
    %v1844 = vunpack.c.l.b16 %v1652
    %v1845 = vunpack.c.l.b16 %v1653
    %v1846 = vunpack.c.l.b16 %v1654
    %v1847 = vunpack.c.l.b16 %v1655
    %v1848 = vunpack.c.h.b16 %v1644
    %v1849 = vunpack.c.h.b16 %v1645
    %v1850 = vunpack.c.h.b16 %v1646
    %v1851 = vunpack.c.h.b16 %v1647
    %v1852 = vunpack.c.h.b16 %v1648
    %v1853 = vunpack.c.h.b16 %v1649
    %v1854 = vunpack.c.h.b16 %v1650
    %v1855 = vunpack.c.h.b16 %v1651
    %v1856 = vunpack.c.h.b16 %v1652
    %v1857 = vunpack.c.h.b16 %v1653
    %v1858 = vunpack.c.h.b16 %v1654
    %v1859 = vunpack.c.h.b16 %v1655
    %v1860 = vunpack.c.l.b16 %v1656
    %v1861 = vunpack.c.l.b16 %v1657
    %v1862 = vunpack.c.l.b16 %v1658
    %v1863 = vunpack.c.l.b16 %v1659
    %v1864 = vunpack.c.l.b16 %v1660
    %v1865 = vunpack.c.l.b16 %v1661
    %v1866 = vunpack.c.l.b16 %v1662
    %v1867 = vunpack.c.l.b16 %v1663
    %v1868 = vunpack.c.l.b16 %v1664
    %v1869 = vunpack.c.l.b16 %v1665
    %v1870 = vunpack.c.l.b16 %v1666
    %v1871 = vunpack.c.l.b16 %v1667
    %v1872 = vunpack.c.h.b16 %v1656
    %v1873 = vunpack.c.h.b16 %v1657
    %v1874 = vunpack.c.h.b16 %v1658
    %v1875 = vunpack.c.h.b16 %v1659
    %v1876 = vunpack.c.h.b16 %v1660
    %v1877 = vunpack.c.h.b16 %v1661
    %v1878 = vunpack.c.h.b16 %v1662
    %v1879 = vunpack.c.h.b16 %v1663
    %v1880 = vunpack.c.h.b16 %v1664
    %v1881 = vunpack.c.h.b16 %v1665
    %v1882 = vunpack.c.h.b16 %v1666
    %v1883 = vunpack.c.h.b16 %v1667
    %v1884 = vunpack.c.l.b16 %v1668
    %v1885 = vunpack.c.l.b16 %v1669
    %v1886 = vunpack.c.l.b16 %v1670
    %v1887 = vunpack.c.l.b16 %v1671
    %v1888 = vunpack.c.l.b16 %v1672
    %v1889 = vunpack.c.l.b16 %v1673
    %v1890 = vunpack.c.l.b16 %v1674
    %v1891 = vunpack.c.l.b16 %v1675
    %v1892 = vunpack.c.l.b16 %v1676
    %v1893 = vunpack.c.l.b16 %v1677
    %v1894 = vunpack.c.l.b16 %v1678
    %v1895 = vunpack.c.l.b16 %v1679
    %v1896 = vunpack.c.h.b16 %v1668
    %v1897 = vunpack.c.h.b16 %v1669
    %v1898 = vunpack.c.h.b16 %v1670
    %v1899 = vunpack.c.h.b16 %v1671
    %v1900 = vunpack.c.h.b16 %v1672
    %v1901 = vunpack.c.h.b16 %v1673
    %v1902 = vunpack.c.h.b16 %v1674
    %v1903 = vunpack.c.h.b16 %v1675
    %v1904 = vunpack.c.h.b16 %v1676
    %v1905 = vunpack.c.h.b16 %v1677
    %v1906 = vunpack.c.h.b16 %v1678
    %v1907 = vunpack.c.h.b16 %v1679
    %v1908 = vunpack.c.l.b16 %v1680
    %v1909 = vunpack.c.l.b16 %v1681
    %v1910 = vunpack.c.l.b16 %v1682
    %v1911 = vunpack.c.l.b16 %v1683
    %v1912 = vunpack.c.l.b16 %v1684
    %v1913 = vunpack.c.l.b16 %v1685
    %v1914 = vunpack.c.l.b16 %v1686
    %v1915 = vunpack.c.l.b16 %v1687
    %v1916 = vunpack.c.l.b16 %v1688
    %v1917 = vunpack.c.l.b16 %v1689
    %v1918 = vunpack.c.l.b16 %v1690
    %v1919 = vunpack.c.l.b16 %v1691
    %v1920 = vunpack.c.h.b16 %v1680
    %v1921 = vunpack.c.h.b16 %v1681
    %v1922 = vunpack.c.h.b16 %v1682
    %v1923 = vunpack.c.h.b16 %v1683
    %v1924 = vunpack.c.h.b16 %v1684
    %v1925 = vunpack.c.h.b16 %v1685
    %v1926 = vunpack.c.h.b16 %v1686
    %v1927 = vunpack.c.h.b16 %v1687
    %v1928 = vunpack.c.h.b16 %v1688
    %v1929 = vunpack.c.h.b16 %v1689
    %v1930 = vunpack.c.h.b16 %v1690
    %v1931 = vunpack.c.h.b16 %v1691
    %v1932 = vunpack.c.l.b16 %v1692
    %v1933 = vunpack.c.l.b16 %v1693
    %v1934 = vunpack.c.l.b16 %v1694
    %v1935 = vunpack.c.l.b16 %v1695
    %v1936 = vunpack.c.l.b16 %v1696
    %v1937 = vunpack.c.l.b16 %v1697
    %v1938 = vunpack.c.l.b16 %v1698
    %v1939 = vunpack.c.l.b16 %v1699
    %v1940 = vunpack.c.l.b16 %v1700
    %v1941 = vunpack.c.l.b16 %v1701
    %v1942 = vunpack.c.l.b16 %v1702
    %v1943 = vunpack.c.l.b16 %v1703
    %v1944 = vunpack.c.h.b16 %v1692
    %v1945 = vunpack.c.h.b16 %v1693
    %v1946 = vunpack.c.h.b16 %v1694
    %v1947 = vunpack.c.h.b16 %v1695
    %v1948 = vunpack.c.h.b16 %v1696
    %v1949 = vunpack.c.h.b16 %v1697
    %v1950 = vunpack.c.h.b16 %v1698
    %v1951 = vunpack.c.h.b16 %v1699
    %v1952 = vunpack.c.h.b16 %v1700
    %v1953 = vunpack.c.h.b16 %v1701
    %v1954 = vunpack.c.h.b16 %v1702
    %v1955 = vunpack.c.h.b16 %v1703
    %v1956 = vunpack.c.l.b16 %v1704
    %v1957 = vunpack.c.l.b16 %v1705
    %v1958 = vunpack.c.l.b16 %v1706
    %v1959 = vunpack.c.l.b16 %v1707
    %v1960 = vunpack.c.l.b16 %v1708
    %v1961 = vunpack.c.l.b16 %v1709
    %v1962 = vunpack.c.l.b16 %v1710
    %v1963 = vunpack.c.l.b16 %v1711
    %v1964 = vunpack.c.l.b16 %v1712
    %v1965 = vunpack.c.l.b16 %v1713
    %v1966 = vunpack.c.l.b16 %v1714
    %v1967 = vunpack.c.l.b16 %v1715
    %v1968 = vunpack.c.h.b16 %v1704
    %v1969 = vunpack.c.h.b16 %v1705
    %v1970 = vunpack.c.h.b16 %v1706
    %v1971 = vunpack.c.h.b16 %v1707
    %v1972 = vunpack.c.h.b16 %v1708
    %v1973 = vunpack.c.h.b16 %v1709
    %v1974 = vunpack.c.h.b16 %v1710
    %v1975 = vunpack.c.h.b16 %v1711
    %v1976 = vunpack.c.h.b16 %v1712
    %v1977 = vunpack.c.h.b16 %v1713
    %v1978 = vunpack.c.h.b16 %v1714
    %v1979 = vunpack.c.h.b16 %v1715
    %v1980 = vunpack.c.l.b16 %v1716
    %v1981 = vunpack.c.l.b16 %v1717
    %v1982 = vunpack.c.l.b16 %v1718
    %v1983 = vunpack.c.l.b16 %v1719
    %v1984 = vunpack.c.l.b16 %v1720
    %v1985 = vunpack.c.l.b16 %v1721
    %v1986 = vunpack.c.l.b16 %v1722
    %v1987 = vunpack.c.l.b16 %v1723
    %v1988 = vunpack.c.l.b16 %v1724
    %v1989 = vunpack.c.l.b16 %v1725
    %v1990 = vunpack.c.l.b16 %v1726
    %v1991 = vunpack.c.l.b16 %v1727
    %v1992 = vunpack.c.h.b16 %v1716
    %v1993 = vunpack.c.h.b16 %v1717
    %v1994 = vunpack.c.h.b16 %v1718
    %v1995 = vunpack.c.h.b16 %v1719
    %v1996 = vunpack.c.h.b16 %v1720
    %v1997 = vunpack.c.h.b16 %v1721
    %v1998 = vunpack.c.h.b16 %v1722
    %v1999 = vunpack.c.h.b16 %v1723
    %v2000 = vunpack.c.h.b16 %v1724
    %v2001 = vunpack.c.h.b16 %v1725
    %v2002 = vunpack.c.h.b16 %v1726
    %v2003 = vunpack.c.h.b16 %v1727
    %v2004 = vunpack.c.l.b16 %v1728
    %v2005 = vunpack.c.l.b16 %v1729
    %v2006 = vunpack.c.l.b16 %v1730
    %v2007 = vunpack.c.l.b16 %v1731
    %v2008 = vunpack.c.l.b16 %v1732
    %v2009 = vunpack.c.l.b16 %v1733
    %v2010 = vunpack.c.l.b16 %v1734
    %v2011 = vunpack.c.l.b16 %v1735
    %v2012 = vunpack.c.l.b16 %v1736
    %v2013 = vunpack.c.l.b16 %v1737
    %v2014 = vunpack.c.l.b16 %v1738
    %v2015 = vunpack.c.l.b16 %v1739
    %v2016 = vunpack.c.h.b16 %v1728
    %v2017 = vunpack.c.h.b16 %v1729
    %v2018 = vunpack.c.h.b16 %v1730
    %v2019 = vunpack.c.h.b16 %v1731
    %v2020 = vunpack.c.h.b16 %v1732
    %v2021 = vunpack.c.h.b16 %v1733
    %v2022 = vunpack.c.h.b16 %v1734
    %v2023 = vunpack.c.h.b16 %v1735
    %v2024 = vunpack.c.h.b16 %v1736
    %v2025 = vunpack.c.h.b16 %v1737
    %v2026 = vunpack.c.h.b16 %v1738
    %v2027 = vunpack.c.h.b16 %v1739
    %v2028 = vpack.c.b16 %v1837, %v1836
    %v2029 = vpack.c.b16 %v1839, %v1838
    %v2030 = vpack.c.b16 %v1841, %v1840
    %v2031 = vpack.c.b16 %v1843, %v1842
    %v2032 = vpack.c.b16 %v1845, %v1844
    %v2033 = vpack.c.b16 %v1847, %v1846
    %v2034 = vpack.c.b16 %v1849, %v1848
    %v2035 = vpack.c.b16 %v1851, %v1850
    %v2036 = vpack.c.b16 %v1853, %v1852
    %v2037 = vpack.c.b16 %v1855, %v1854
    %v2038 = vpack.c.b16 %v1857, %v1856
    %v2039 = vpack.c.b16 %v1859, %v1858
    %v2040 = vpack.c.b16 %v1861, %v1860
    %v2041 = vpack.c.b16 %v1863, %v1862
    %v2042 = vpack.c.b16 %v1865, %v1864
    %v2043 = vpack.c.b16 %v1867, %v1866
    %v2044 = vpack.c.b16 %v1869, %v1868
    %v2045 = vpack.c.b16 %v1871, %v1870
    %v2046 = vpack.c.b16 %v1873, %v1872
    %v2047 = vpack.c.b16 %v1875, %v1874
    %v2048 = vpack.c.b16 %v1877, %v1876
    %v2049 = vpack.c.b16 %v1879, %v1878
    %v2050 = vpack.c.b16 %v1881, %v1880
    %v2051 = vpack.c.b16 %v1883, %v1882
    %v2052 = vpack.c.b16 %v1885, %v1884
    %v2053 = vpack.c.b16 %v1887, %v1886
    %v2054 = vpack.c.b16 %v1889, %v1888
    %v2055 = vpack.c.b16 %v1891, %v1890
    %v2056 = vpack.c.b16 %v1893, %v1892
    %v2057 = vpack.c.b16 %v1895, %v1894
    %v2058 = vpack.c.b16 %v1897, %v1896
    %v2059 = vpack.c.b16 %v1899, %v1898
    %v2060 = vpack.c.b16 %v1901, %v1900
    %v2061 = vpack.c.b16 %v1903, %v1902
    %v2062 = vpack.c.b16 %v1905, %v1904
    %v2063 = vpack.c.b16 %v1907, %v1906
    %v2064 = vpack.c.b16 %v1909, %v1908
    %v2065 = vpack.c.b16 %v1911, %v1910
    %v2066 = vpack.c.b16 %v1913, %v1912
    %v2067 = vpack.c.b16 %v1915, %v1914
    %v2068 = vpack.c.b16 %v1917, %v1916
    %v2069 = vpack.c.b16 %v1919, %v1918
    %v2070 = vpack.c.b16 %v1921, %v1920
    %v2071 = vpack.c.b16 %v1923, %v1922
    %v2072 = vpack.c.b16 %v1925, %v1924
    %v2073 = vpack.c.b16 %v1927, %v1926
    %v2074 = vpack.c.b16 %v1929, %v1928
    %v2075 = vpack.c.b16 %v1931, %v1930
    %v2076 = vpack.c.b16 %v1933, %v1932
    %v2077 = vpack.c.b16 %v1935, %v1934
    %v2078 = vpack.c.b16 %v1937, %v1936
    %v2079 = vpack.c.b16 %v1939, %v1938
    %v2080 = vpack.c.b16 %v1941, %v1940
    %v2081 = vpack.c.b16 %v1943, %v1942
    %v2082 = vpack.c.b16 %v1945, %v1944
    %v2083 = vpack.c.b16 %v1947, %v1946
    %v2084 = vpack.c.b16 %v1949, %v1948
    %v2085 = vpack.c.b16 %v1951, %v1950
    %v2086 = vpack.c.b16 %v1953, %v1952
    %v2087 = vpack.c.b16 %v1955, %v1954
    %v2088 = vpack.c.b16 %v1957, %v1956
    %v2089 = vpack.c.b16 %v1959, %v1958
    %v2090 = vpack.c.b16 %v1961, %v1960
    %v2091 = vpack.c.b16 %v1963, %v1962
    %v2092 = vpack.c.b16 %v1965, %v1964
    %v2093 = vpack.c.b16 %v1967, %v1966
    %v2094 = vpack.c.b16 %v1969, %v1968
    %v2095 = vpack.c.b16 %v1971, %v1970
    %v2096 = vpack.c.b16 %v1973, %v1972
    %v2097 = vpack.c.b16 %v1975, %v1974
    %v2098 = vpack.c.b16 %v1977, %v1976
    %v2099 = vpack.c.b16 %v1979, %v1978
    %v2100 = vpack.c.b16 %v1981, %v1980
    %v2101 = vpack.c.b16 %v1983, %v1982
    %v2102 = vpack.c.b16 %v1985, %v1984
    %v2103 = vpack.c.b16 %v1987, %v1986
    %v2104 = vpack.c.b16 %v1989, %v1988
    %v2105 = vpack.c.b16 %v1991, %v1990
    %v2106 = vpack.c.b16 %v1993, %v1992
    %v2107 = vpack.c.b16 %v1995, %v1994
    %v2108 = vpack.c.b16 %v1997, %v1996
    %v2109 = vpack.c.b16 %v1999, %v1998
    %v2110 = vpack.c.b16 %v2001, %v2000
    %v2111 = vpack.c.b16 %v2003, %v2002
    %v2112 = vpack.c.b16 %v2005, %v2004
    %v2113 = vpack.c.b16 %v2007, %v2006
    %v2114 = vpack.c.b16 %v2009, %v2008
    %v2115 = vpack.c.b16 %v2011, %v2010
    %v2116 = vpack.c.b16 %v2013, %v2012
    %v2117 = vpack.c.b16 %v2015, %v2014
    %v2118 = vpack.c.b16 %v2017, %v2016
    %v2119 = vpack.c.b16 %v2019, %v2018
    %v2120 = vpack.c.b16 %v2021, %v2020
    %v2121 = vpack.c.b16 %v2023, %v2022
    %v2122 = vpack.c.b16 %v2025, %v2024
    %v2123 = vpack.c.b16 %v2027, %v2026
    %2220 = vst [vmem:[#allocation4] sm:$0xff] %v2028
    %2221 = vst [vmem:[#allocation4 + $0x8] sm:$0xff] %v2029
    %2222 = vst [vmem:[#allocation4 + $0x10] sm:$0xff] %v2030
    %2223 = vst [vmem:[#allocation4 + $0x18] sm:$0xff] %v2031
    %2224 = vst [vmem:[#allocation4 + $0x20] sm:$0xff] %v2032
    %2225 = vst [vmem:[#allocation4 + $0x28] sm:$0xff] %v2033
    %2226 = vst [vmem:[#allocation4 + $0x30] sm:$0xff] %v2034
    %2227 = vst [vmem:[#allocation4 + $0x38] sm:$0xff] %v2035
    %2228 = vst [vmem:[#allocation4 + $0x40] sm:$0xff] %v2036
    %2229 = vst [vmem:[#allocation4 + $0x48] sm:$0xff] %v2037
    %2230 = vst [vmem:[#allocation4 + $0x50] sm:$0xff] %v2038
    %2231 = vst [vmem:[#allocation4 + $0x58] sm:$0xff] %v2039
    %2232 = vst [vmem:[#allocation4 + $0x60] sm:$0xff] %v2040
    %2233 = vst [vmem:[#allocation4 + $0x68] sm:$0xff] %v2041
    %2234 = vst [vmem:[#allocation4 + $0x70] sm:$0xff] %v2042
    %2235 = vst [vmem:[#allocation4 + $0x78] sm:$0xff] %v2043
    %2236 = vst [vmem:[#allocation4 + $0x80] sm:$0xff] %v2044
    %2237 = vst [vmem:[#allocation4 + $0x88] sm:$0xff] %v2045
    %2238 = vst [vmem:[#allocation4 + $0x90] sm:$0xff] %v2046
    %2239 = vst [vmem:[#allocation4 + $0x98] sm:$0xff] %v2047
    %2240 = vst [vmem:[#allocation4 + $0xa0] sm:$0xff] %v2048
    %2241 = vst [vmem:[#allocation4 + $0xa8] sm:$0xff] %v2049
    %2242 = vst [vmem:[#allocation4 + $0xb0] sm:$0xff] %v2050
    %2243 = vst [vmem:[#allocation4 + $0xb8] sm:$0xff] %v2051
    %2244 = vst [vmem:[#allocation4 + $0xc0] sm:$0xff] %v2052
    %2245 = vst [vmem:[#allocation4 + $0xc8] sm:$0xff] %v2053
    %2246 = vst [vmem:[#allocation4 + $0xd0] sm:$0xff] %v2054
    %2247 = vst [vmem:[#allocation4 + $0xd8] sm:$0xff] %v2055
    %2248 = vst [vmem:[#allocation4 + $0xe0] sm:$0xff] %v2056
    %2249 = vst [vmem:[#allocation4 + $0xe8] sm:$0xff] %v2057
    %2250 = vst [vmem:[#allocation4 + $0xf0] sm:$0xff] %v2058
    %2251 = vst [vmem:[#allocation4 + $0xf8] sm:$0xff] %v2059
    %2252 = vst [vmem:[#allocation4 + $0x100] sm:$0xff] %v2060
    %2253 = vst [vmem:[#allocation4 + $0x108] sm:$0xff] %v2061
    %2254 = vst [vmem:[#allocation4 + $0x110] sm:$0xff] %v2062
    %2255 = vst [vmem:[#allocation4 + $0x118] sm:$0xff] %v2063
    %2256 = vst [vmem:[#allocation4 + $0x120] sm:$0xff] %v2064
    %2257 = vst [vmem:[#allocation4 + $0x128] sm:$0xff] %v2065
    %2258 = vst [vmem:[#allocation4 + $0x130] sm:$0xff] %v2066
    %2259 = vst [vmem:[#allocation4 + $0x138] sm:$0xff] %v2067
    %2260 = vst [vmem:[#allocation4 + $0x140] sm:$0xff] %v2068
    %2261 = vst [vmem:[#allocation4 + $0x148] sm:$0xff] %v2069
    %2262 = vst [vmem:[#allocation4 + $0x150] sm:$0xff] %v2070
    %2263 = vst [vmem:[#allocation4 + $0x158] sm:$0xff] %v2071
    %2264 = vst [vmem:[#allocation4 + $0x160] sm:$0xff] %v2072
    %2265 = vst [vmem:[#allocation4 + $0x168] sm:$0xff] %v2073
    %2266 = vst [vmem:[#allocation4 + $0x170] sm:$0xff] %v2074
    %2267 = vst [vmem:[#allocation4 + $0x178] sm:$0xff] %v2075
    %2268 = vst [vmem:[#allocation4 + $0x180] sm:$0xff] %v2076
    %2269 = vst [vmem:[#allocation4 + $0x188] sm:$0xff] %v2077
    %2270 = vst [vmem:[#allocation4 + $0x190] sm:$0xff] %v2078
    %2271 = vst [vmem:[#allocation4 + $0x198] sm:$0xff] %v2079
    %2272 = vst [vmem:[#allocation4 + $0x1a0] sm:$0xff] %v2080
    %2273 = vst [vmem:[#allocation4 + $0x1a8] sm:$0xff] %v2081
    %2274 = vst [vmem:[#allocation4 + $0x1b0] sm:$0xff] %v2082
    %2275 = vst [vmem:[#allocation4 + $0x1b8] sm:$0xff] %v2083
    %2276 = vst [vmem:[#allocation4 + $0x1c0] sm:$0xff] %v2084
    %2277 = vst [vmem:[#allocation4 + $0x1c8] sm:$0xff] %v2085
    %2278 = vst [vmem:[#allocation4 + $0x1d0] sm:$0xff] %v2086
    %2279 = vst [vmem:[#allocation4 + $0x1d8] sm:$0xff] %v2087
    %2280 = vst [vmem:[#allocation4 + $0x1e0] sm:$0xff] %v2088
    %2281 = vst [vmem:[#allocation4 + $0x1e8] sm:$0xff] %v2089
    %2282 = vst [vmem:[#allocation4 + $0x1f0] sm:$0xff] %v2090
    %2283 = vst [vmem:[#allocation4 + $0x1f8] sm:$0xff] %v2091
    %2284 = vst [vmem:[#allocation4 + $0x200] sm:$0xff] %v2092
    %2285 = vst [vmem:[#allocation4 + $0x208] sm:$0xff] %v2093
    %2286 = vst [vmem:[#allocation4 + $0x210] sm:$0xff] %v2094
    %2287 = vst [vmem:[#allocation4 + $0x218] sm:$0xff] %v2095
    %2288 = vst [vmem:[#allocation4 + $0x220] sm:$0xff] %v2096
    %2289 = vst [vmem:[#allocation4 + $0x228] sm:$0xff] %v2097
    %2290 = vst [vmem:[#allocation4 + $0x230] sm:$0xff] %v2098
    %2291 = vst [vmem:[#allocation4 + $0x238] sm:$0xff] %v2099
    %2292 = vst [vmem:[#allocation4 + $0x240] sm:$0xff] %v2100
    %2293 = vst [vmem:[#allocation4 + $0x248] sm:$0xff] %v2101
    %2294 = vst [vmem:[#allocation4 + $0x250] sm:$0xff] %v2102
    %2295 = vst [vmem:[#allocation4 + $0x258] sm:$0xff] %v2103
    %2296 = vst [vmem:[#allocation4 + $0x260] sm:$0xff] %v2104
    %2297 = vst [vmem:[#allocation4 + $0x268] sm:$0xff] %v2105
    %2298 = vst [vmem:[#allocation4 + $0x270] sm:$0xff] %v2106
    %2299 = vst [vmem:[#allocation4 + $0x278] sm:$0xff] %v2107
    %2300 = vst [vmem:[#allocation4 + $0x280] sm:$0xff] %v2108
    %2301 = vst [vmem:[#allocation4 + $0x288] sm:$0xff] %v2109
    %2302 = vst [vmem:[#allocation4 + $0x290] sm:$0xff] %v2110
    %2303 = vst [vmem:[#allocation4 + $0x298] sm:$0xff] %v2111
    %2304 = vst [vmem:[#allocation4 + $0x2a0] sm:$0xff] %v2112
    %2305 = vst [vmem:[#allocation4 + $0x2a8] sm:$0xff] %v2113
    %2306 = vst [vmem:[#allocation4 + $0x2b0] sm:$0xff] %v2114
    %2307 = vst [vmem:[#allocation4 + $0x2b8] sm:$0xff] %v2115
    %2308 = vst [vmem:[#allocation4 + $0x2c0] sm:$0xff] %v2116
    %2309 = vst [vmem:[#allocation4 + $0x2c8] sm:$0xff] %v2117
    %2310 = vst [vmem:[#allocation4 + $0x2d0] sm:$0xff] %v2118
    %2311 = vst [vmem:[#allocation4 + $0x2d8] sm:$0xff] %v2119
    %2312 = vst [vmem:[#allocation4 + $0x2e0] sm:$0xff] %v2120
    %2313 = vst [vmem:[#allocation4 + $0x2e8] sm:$0xff] %v2121
    %2314 = vst [vmem:[#allocation4 + $0x2f0] sm:$0xff] %v2122
    %2315 = vst [vmem:[#allocation4 + $0x2f8] sm:$0xff] %v2123
    %v2316 = vld [vmem:[%s2] sm:$0xff]
    %2317 = vmatprep.subr.mxu0 0.0
    %2318 = vmatpush1.msra.mxu0 %v2316
    %2319 = vmatprep.subr.mxu0 0.0
    %2320 = vmatpush1.msra.mxu0 0.0
    %2321 = vmatprep.subr.mxu0 0.0
    %2322 = vmatpush1.msra.mxu0 0.0
    %2323 = vmatprep.subr.mxu0 0.0
    %2324 = vmatpush1.msra.mxu0 0.0
    %2325 = vmatprep.subr.mxu0 0.0
    %2326 = vmatpush1.msra.mxu0 0.0
    %2327 = vmatprep.subr.mxu0 0.0
    %2328 = vmatpush1.msra.mxu0 0.0
    %2329 = vmatprep.subr.mxu0 0.0
    %2330 = vmatpush1.msra.mxu0 0.0
    %2331 = vmatprep.subr.mxu0 0.0
    %2332 = vmatpush1.msra.mxu0 0.0
    %2333 = vmatprep.subr.mxu0 0.0
    %2334 = vmatpush1.msra.mxu0 0.0
    %2335 = vmatprep.subr.mxu0 0.0
    %2336 = vmatpush1.msra.mxu0 0.0
    %2337 = vmatprep.subr.mxu0 0.0
    %2338 = vmatpush1.msra.mxu0 0.0
    %2339 = vmatprep.subr.mxu0 0.0
    %2340 = vmatpush1.msra.mxu0 0.0
    %2341 = vmatprep.subr.mxu0 0.0
    %2342 = vmatpush1.msra.mxu0 0.0
    %2343 = vmatprep.subr.mxu0 0.0
    %2344 = vmatpush1.msra.mxu0 0.0
    %2345 = vmatprep.subr.mxu0 0.0
    %2346 = vmatpush1.msra.mxu0 0.0
    %2347 = vmatprep.subr.mxu0 0.0
    %2348 = vmatpush1.msra.mxu0 0.0
    %2349 = vmatprep.subr.mxu0 0.0
    %2350 = vmatpush1.msra.mxu0 0.0
    %2351 = vmatprep.subr.mxu0 0.0
    %2352 = vmatpush1.msra.mxu0 0.0
    %2353 = vmatprep.subr.mxu0 0.0
    %2354 = vmatpush1.msra.mxu0 0.0
    %2355 = vmatprep.subr.mxu0 0.0
    %2356 = vmatpush1.msra.mxu0 0.0
    %2357 = vmatprep.subr.mxu0 0.0
    %2358 = vmatpush1.msra.mxu0 0.0
    %2359 = vmatprep.subr.mxu0 0.0
    %2360 = vmatpush1.msra.mxu0 0.0
    %2361 = vmatprep.subr.mxu0 0.0
    %2362 = vmatpush1.msra.mxu0 0.0
    %2363 = vmatprep.subr.mxu0 0.0
    %2364 = vmatpush1.msra.mxu0 0.0
    %2365 = vmatprep.subr.mxu0 0.0
    %2366 = vmatpush1.msra.mxu0 0.0
    %2367 = vmatprep.subr.mxu0 0.0
    %2368 = vmatpush1.msra.mxu0 0.0
    %2369 = vmatprep.subr.mxu0 0.0
    %2370 = vmatpush1.msra.mxu0 0.0
    %2371 = vmatprep.subr.mxu0 0.0
    %2372 = vmatpush1.msra.mxu0 0.0
    %2373 = vmatprep.subr.mxu0 0.0
    %2374 = vmatpush1.msra.mxu0 0.0
    %2375 = vmatprep.subr.mxu0 0.0
    %2376 = vmatpush1.msra.mxu0 0.0
    %2377 = vmatprep.subr.mxu0 0.0
    %2378 = vmatpush1.msra.mxu0 0.0
    %2379 = vmatprep.subr.mxu0 0.0
    %2380 = vmatpush1.msra.mxu0 0.0
    %2381 = vmatprep.mubr.f32.mxu0 0.0
    %2382 = vmatmul.mubr.f32.gmra.mrb[0].mxu0 %v38
    %v2383 = vpop.f32.mrb[0].mxu0
    %v2384 = vadd.f32 0.0, %v2383
    %v2385 = vpop.f32.mrb[0].mxu0
    %2386 = vmatprep.mubr.f32.mxu0 0.0
    %2387 = vmatmul.mubr.f32.gmra.mrb[0].mxu0 %v41
    %v2388 = vpop.f32.mrb[0].mxu0
    %v2389 = vadd.f32 0.0, %v2388
    %v2390 = vpop.f32.mrb[0].mxu0
    %2391 = vmatprep.mubr.f32.mxu0 0.0
    %2392 = vmatmul.mubr.f32.gmra.mrb[0].mxu0 %v44
    %v2393 = vpop.f32.mrb[0].mxu0
    %v2394 = vadd.f32 0.0, %v2393
    %v2395 = vpop.f32.mrb[0].mxu0
    %2396 = vmatprep.mubr.f32.mxu0 0.0
    %2397 = vmatmul.mubr.f32.gmra.mrb[0].mxu0 %v47
    %v2398 = vpop.f32.mrb[0].mxu0
    %v2399 = vadd.f32 0.0, %v2398
    %v2400 = vpop.f32.mrb[0].mxu0
    %2401 = vmatprep.mubr.f32.mxu0 0.0
    %2402 = vmatmul.mubr.f32.gmra.mrb[0].mxu0 %v50
    %v2403 = vpop.f32.mrb[0].mxu0
    %v2404 = vadd.f32 0.0, %v2403
    %v2405 = vpop.f32.mrb[0].mxu0
    %2406 = vmatprep.mubr.f32.mxu0 0.0
    %2407 = vmatmul.mubr.f32.gmra.mrb[0].mxu0 %v53
    %v2408 = vpop.f32.mrb[0].mxu0
    %v2409 = vadd.f32 0.0, %v2408
    %v2410 = vpop.f32.mrb[0].mxu0
    %2411 = vmatprep.mubr.f32.mxu0 0.0
    %2412 = vmatmul.mubr.f32.gmra.mrb[0].mxu0 %v56
    %v2413 = vpop.f32.mrb[0].mxu0
    %v2414 = vadd.f32 0.0, %v2413
    %v2415 = vpop.f32.mrb[0].mxu0
    %2416 = vmatprep.mubr.f32.mxu0 0.0
    %2417 = vmatmul.mubr.f32.gmra.mrb[0].mxu0 %v59
    %v2418 = vpop.f32.mrb[0].mxu0
    %v2419 = vadd.f32 0.0, %v2418
    %v2420 = vpop.f32.mrb[0].mxu0
    %2421 = vmatprep.mubr.f32.mxu0 0.0
    %2422 = vmatmul.mubr.f32.gmra.mrb[0].mxu0 %v62
    %v2423 = vpop.f32.mrb[0].mxu0
    %v2424 = vadd.f32 0.0, %v2423
    %v2425 = vpop.f32.mrb[0].mxu0
    %2426 = vmatprep.mubr.f32.mxu0 0.0
    %2427 = vmatmul.mubr.f32.gmra.mrb[0].mxu0 %v65
    %v2428 = vpop.f32.mrb[0].mxu0
    %v2429 = vadd.f32 0.0, %v2428
    %v2430 = vpop.f32.mrb[0].mxu0
    %2431 = vmatprep.mubr.f32.mxu0 0.0
    %2432 = vmatmul.mubr.f32.gmra.mrb[0].mxu0 %v68
    %v2433 = vpop.f32.mrb[0].mxu0
    %v2434 = vadd.f32 0.0, %v2433
    %v2435 = vpop.f32.mrb[0].mxu0
    %2436 = vmatprep.mubr.f32.mxu0 0.0
    %2437 = vmatmul.mubr.f32.gmra.mrb[0].mxu0 %v71
    %v2438 = vpop.f32.mrb[0].mxu0
    %v2439 = vadd.f32 0.0, %v2438
    %v2440 = vpop.f32.mrb[0].mxu0
    %2441 = vmatprep.mubr.f32.mxu0 0.0
    %2442 = vmatmul.mubr.f32.gmra.mrb[0].mxu0 %v74
    %v2443 = vpop.f32.mrb[0].mxu0
    %v2444 = vadd.f32 0.0, %v2443
    %v2445 = vpop.f32.mrb[0].mxu0
    %2446 = vmatprep.mubr.f32.mxu0 0.0
    %2447 = vmatmul.mubr.f32.gmra.mrb[0].mxu0 %v77
    %v2448 = vpop.f32.mrb[0].mxu0
    %v2449 = vadd.f32 0.0, %v2448
    %v2450 = vpop.f32.mrb[0].mxu0
    %2451 = vmatprep.mubr.f32.mxu0 0.0
    %2452 = vmatmul.mubr.f32.gmra.mrb[0].mxu0 %v80
    %v2453 = vpop.f32.mrb[0].mxu0
    %v2454 = vadd.f32 0.0, %v2453
    %v2455 = vpop.f32.mrb[0].mxu0
    %2456 = vmatprep.mubr.f32.mxu0 0.0
    %2457 = vmatmul.mubr.f32.gmra.mrb[0].mxu0 %v83
    %v2458 = vpop.f32.mrb[0].mxu0
    %v2459 = vadd.f32 0.0, %v2458
    %v2460 = vpop.f32.mrb[0].mxu0
    %2461 = vdwg.mxu0
    %2462 = vst [vmem:[#allocation6] sm:$0xff] %v2384
    %2463 = vst [vmem:[#allocation6 + $0x8] sm:$0xff] %v2389
    %2464 = vst [vmem:[#allocation6 + $0x10] sm:$0xff] %v2394
    %2465 = vst [vmem:[#allocation6 + $0x18] sm:$0xff] %v2399
    %2466 = vst [vmem:[#allocation6 + $0x20] sm:$0xff] %v2404
    %2467 = vst [vmem:[#allocation6 + $0x28] sm:$0xff] %v2409
    %2468 = vst [vmem:[#allocation6 + $0x30] sm:$0xff] %v2414
    %2469 = vst [vmem:[#allocation6 + $0x38] sm:$0xff] %v2419
    %2470 = vst [vmem:[#allocation6 + $0x40] sm:$0xff] %v2424
    %2471 = vst [vmem:[#allocation6 + $0x48] sm:$0xff] %v2429
    %2472 = vst [vmem:[#allocation6 + $0x50] sm:$0xff] %v2434
    %2473 = vst [vmem:[#allocation6 + $0x58] sm:$0xff] %v2439
    %2474 = vst [vmem:[#allocation6 + $0x60] sm:$0xff] %v2444
    %2475 = vst [vmem:[#allocation6 + $0x68] sm:$0xff] %v2449
    %2476 = vst [vmem:[#allocation6 + $0x70] sm:$0xff] %v2454
    %2477 = vst [vmem:[#allocation6 + $0x78] sm:$0xff] %v2459
    // Predicated region
    $region14: #{tpu_custom_call.1} parent=1 // pred_check
      _
    $region15: #{tpu_custom_call.1} parent=1 // pred_check_branch
      %2479 = sbr.rel (0) target = $region17
    $region16: #{tpu_custom_call.1} parent=1 // pred_region
      %s2481 = ssub.s32 3072, 3072
      %2482 = vsyncadd [#allocation3], %s2481
      %s2483 = sshll.u32 [#allocation2], 4
      %s2484 = int_to_ptr.vmem [resolvable:$true] %s2483
      %2489 = dma.vmem_to_hbm [thread:$0]  %s2484, 3072, %s3, [#allocation3], 64, 64, 4
    $region17: #{tpu_custom_call.1} parent=1 // pred_fallthru
      _
    // Predicated region
    $region18: #{tpu_custom_call.1} parent=1 // pred_check
      _
    $region19: #{tpu_custom_call.1} parent=1 // pred_check_branch
      %2491 = sbr.rel (0) target = $region21
    $region20: #{tpu_custom_call.1} parent=1 // pred_region
      %s2493 = ssub.s32 12288, 12288
      %2494 = vsyncadd [#allocation5], %s2493
      %s2495 = sshll.u32 [#allocation4], 4
      %s2496 = int_to_ptr.vmem [resolvable:$true] %s2495
      %2501 = dma.vmem_to_hbm [thread:$0]  %s2496, 12288, %s4, [#allocation5], 768, 768, 48
    $region21: #{tpu_custom_call.1} parent=1 // pred_fallthru
      _
    // Predicated region
    $region22: #{tpu_custom_call.1} parent=1 // pred_check
      _
    $region23: #{tpu_custom_call.1} parent=1 // pred_check_branch
      %2503 = sbr.rel (0) target = $region25
    $region24: #{tpu_custom_call.1} parent=1 // pred_region
      %s2505 = ssub.s32 2048, 2048
      %2506 = vsyncadd [#allocation5], %s2505
      %s2507 = sshll.u32 [#allocation6], 4
      %s2508 = int_to_ptr.vmem [resolvable:$true] %s2507
      %2513 = dma.vmem_to_hbm [thread:$0]  %s2508, 2048, %s5, [#allocation5], 128, 128, 8
    $region25: #{tpu_custom_call.1} parent=1 // pred_fallthru
      _
    // Predicated region
    $region26: #{tpu_custom_call.1} parent=1 // pred_check
      _
    $region27: #{tpu_custom_call.1} parent=1 // pred_check_branch
      %2515 = sbr.rel (0) target = $region29
    $region28: #{tpu_custom_call.1} parent=1 // pred_region
      %2516 = dma.done [#allocation3], 3072
    $region29: #{tpu_custom_call.1} parent=1 // pred_fallthru
      _
    // Predicated region
    $region30: #{tpu_custom_call.1} parent=1 // pred_check
      _
    $region31: #{tpu_custom_call.1} parent=1 // pred_check_branch
      %2518 = sbr.rel (0) target = $region33
    $region32: #{tpu_custom_call.1} parent=1 // pred_region
      %2519 = dma.done [#allocation5], 12288
    $region33: #{tpu_custom_call.1} parent=1 // pred_fallthru
      _
    // Predicated region
    $region34: #{tpu_custom_call.1} parent=1 // pred_check
      _
    $region35: #{tpu_custom_call.1} parent=1 // pred_check_branch
      %2521 = sbr.rel (0) target = $region37
    $region36: #{tpu_custom_call.1} parent=1 // pred_region
      %2522 = dma.done [#allocation5], 2048
    $region37: #{tpu_custom_call.1} parent=1 // pred_fallthru
      _
    %2523 = vsyncpa [#allocation3], 1
    %2524 = vsyncpa [#allocation5], 1

</llo_original>
